<compile_context>
chip_gen: v7x
topology: tpu7x:2x2x1
jax: 0.10.0
libtpu: 0.0.40
codegen_flags: <defaults>
</compile_context>

<pallas_src>
import functools

import jax
import jax.numpy as jnp
from jax.experimental import pallas as pl
from jax.experimental.pallas import tpu as pltpu


def _mhsa_kernel(x_ref, wqkv_ref, wp_ref, bp_ref, out_ref, *,
                 num_heads, head_dim, seq_len):
    H, D, N = num_heads, head_dim, seq_len
    T, C = x_ref.shape            # T = TB * N rows in this batch tile
    TB = T // N

    # Cast activations to bf16 once; all MXU operands are bf16, accum in f32.
    x = x_ref[...].astype(jnp.bfloat16)                    # (T, C)
    xb = jnp.broadcast_to(x, (H, T, C))                    # head-batched lhs

    # Head-batched fused QKV projection: ONE batched MXU einsum.  Weights were
    # pre-arranged per head as (H, C, 3D) with the softmax scale folded into
    # the q columns, so no per-head lane slicing is needed afterwards.
    qkv = jnp.einsum('htc,hce->hte', xb, wqkv_ref[...],
                     preferred_element_type=jnp.float32)   # (H, T, 3D) f32
    qkv = qkv.astype(jnp.bfloat16)                         # single bf16 cast

    q = qkv[:, :, 0 * D:1 * D]                             # (H, T, D), pre-scaled
    k = qkv[:, :, 1 * D:2 * D]                             # (H, T, D)
    v = qkv[:, :, 2 * D:3 * D]                             # (H, T, D)

    # Attention core, batched over heads.  The only static loop is over the
    # (small) number of batch elements in this tile; its slices are
    # sublane-aligned row slices (N rows each), not sub-lane-width extracts.
    o_parts = []
    for b in range(TB):
        r0 = b * N
        qb = q[:, r0:r0 + N, :]
        kb = k[:, r0:r0 + N, :]
        vb = v[:, r0:r0 + N, :]
        s = jnp.einsum('hnd,hmd->hnm', qb, kb,
                       preferred_element_type=jnp.float32)     # (H, N, N) f32
        m = jnp.max(s, axis=-1, keepdims=True)
        e = jnp.exp(s - m)
        # Exact reciprocal (EUP slot is idle -> essentially free, tighter parity
        # with the f32 reference than approx=True).
        p = e * pl.reciprocal(jnp.sum(e, axis=-1, keepdims=True))
        o_parts.append(jnp.einsum('hnm,hmd->hnd', p.astype(jnp.bfloat16), vb,
                                  preferred_element_type=jnp.float32))
    o = o_parts[0] if TB == 1 else jnp.concatenate(o_parts, axis=1)  # (H, T, D)

    # Output projection done per head ((H,T,D) x (H,D,C)) and reduced over the
    # head axis -- mathematically identical to concat-heads @ Wproj^T, but with
    # no lane-concat relayout.  Bias added in f32.
    y = jnp.einsum('htd,hdc->htc', o.astype(jnp.bfloat16), wp_ref[...],
                   preferred_element_type=jnp.float32)     # (H, T, C) f32
    y = jnp.sum(y, axis=0) + bp_ref[...]                   # (T, C) f32
    out_ref[...] = y.astype(out_ref.dtype)

    # attn_drop / proj_drop have p=0.0 (identity at inference) -> omitted.


def prepare_params(wqkv, wp, bp, num_heads):
    """One-time parameter prep (hoisted out of the per-call forward):
    per-head weight layout, softmax scale folded into q, bf16 cast."""
    three_c, C = wqkv.shape
    assert three_c == 3 * C and C % num_heads == 0
    H = num_heads
    D = C // H
    scale = float(D) ** -0.5
    # PyTorch layout: output channel index of Wqkv rows is (kind, h, d).
    wq = wqkv[0 * C:1 * C].reshape(H, D, C).transpose(0, 2, 1) * scale  # (H,C,D)
    wk = wqkv[1 * C:2 * C].reshape(H, D, C).transpose(0, 2, 1)
    wv = wqkv[2 * C:3 * C].reshape(H, D, C).transpose(0, 2, 1)
    wqkv_h = jnp.concatenate([wq, wk, wv], axis=-1).astype(jnp.bfloat16)  # (H,C,3D)
    # Wproj input channel index is (h, d) -> per-head (H, D, C) layout.
    wp_h = wp.reshape(C, H, D).transpose(1, 2, 0).astype(jnp.bfloat16)    # (H,D,C)
    bp2 = bp.reshape(1, C).astype(jnp.float32)
    return wqkv_h, wp_h, bp2


def _pick_batch_tile(B, want_multi_step, max_tile=8):
    """Batch elements processed per grid step.  Single-TC chips (v5e/v6e): one
    big step (amortize ~0.35us/step, bigger M).  v7x (2 TCs): keep >=2 parallel
    steps so both cores get work.  max_tile bounds the unrolled in-kernel loop
    and the per-step VMEM footprint."""
    if want_multi_step and B >= 2:
        cap = min(B // 2, max_tile)
    else:
        cap = min(B, max_tile)
    for tb in range(cap, 0, -1):
        if B % tb == 0:
            return tb
    return 1


def attention_forward(x, wqkv_h, wp_h, bp2, num_heads, *, batch_tile=None):
    """x: (B, N, C) f32.  wqkv_h/wp_h/bp2: outputs of prepare_params()."""
    B, N, C = x.shape
    H = num_heads
    D = C // H
    # Lane-dense I/O requires the trailing block dim to be a multiple of 128
    # (true for real ViT widths 128/192/384/768/1024; for smaller C, flatten
    # N*C into the trailing dim instead).
    assert C % 128 == 0, "C must be a multiple of 128 for lane-dense I/O blocks"

    if batch_tile is None:
        kind = jax.devices()[0].device_kind.lower()
        TB = _pick_batch_tile(B, want_multi_step=("v7" in kind))
    else:
        TB = batch_tile
    assert B % TB == 0, "batch tile must divide B"
    steps = B // TB
    rows = TB * N

    # Present x / out as (B*N, C) row blocks (free reshape outside the kernel);
    # trailing dim C is a multiple of 128 -> unmasked full-lane stores.
    x2d = x.reshape(B * N, C)

    kernel = functools.partial(_mhsa_kernel, num_heads=H, head_dim=D, seq_len=N)

    flops = (2 * B * N * C * (3 * C)       # qkv projection
             + 4 * B * H * N * N * D       # q@k^T and attn@v
             + 2 * B * N * C * C)          # output projection
    transcendentals = B * H * N * N        # exp in softmax
    bytes_accessed = (2 * B * N * C * 4            # x in + out (f32)
                      + (3 * C * C + C * C) * 2    # bf16 weights
                      + C * 4)                     # bias
    cost = pl.CostEstimate(flops=flops, transcendentals=transcendentals,
                           bytes_accessed=bytes_accessed)

    # Grid-invariant weights/bias: single-buffer them when they are large
    # enough to matter for VMEM (e.g. C>=768 on v7x's 64 MiB part) and the grid
    # actually has more than one step; moot otherwise.
    weight_bytes = (3 * C * C + C * C) * 2
    wkw = ({"pipeline_mode": pl.Buffered(1)}
           if (steps > 1 and weight_bytes > (1 << 20)) else {})

    out2d = pl.pallas_call(
        kernel,
        out_shape=jax.ShapeDtypeStruct((B * N, C), x.dtype),
        grid=(steps,),
        in_specs=[
            pl.BlockSpec((rows, C), lambda i: (i, 0)),                # x rows
            pl.BlockSpec((H, C, 3 * D), lambda i: (0, 0, 0), **wkw),  # Wqkv per head (bf16)
            pl.BlockSpec((H, D, C), lambda i: (0, 0, 0), **wkw),      # Wproj per head (bf16)
            pl.BlockSpec((1, C), lambda i: (0, 0), **wkw),            # proj bias (f32)
        ],
        out_specs=pl.BlockSpec((rows, C), lambda i: (i, 0)),
        compiler_params=pltpu.CompilerParams(dimension_semantics=("parallel",)),
        cost_estimate=cost,
    )(x2d, wqkv_h, wp_h, bp2)
    return out2d.reshape(B, N, C)


def attention_ref(x, wqkv, wp, bp, num_heads):
    """Pure-JAX f32 reference mirroring the PyTorch forward exactly."""
    B, N, C = x.shape
    H = num_heads
    D = C // H
    scale = float(D) ** -0.5
    qkv = (x @ wqkv.T).reshape(B, N, 3, H, D).transpose(2, 0, 3, 1, 4)
    q, k, v = qkv[0], qkv[1], qkv[2]                       # (B, H, N, D)
    attn = (q @ jnp.swapaxes(k, -2, -1)) * scale           # (B, H, N, N)
    attn = jax.nn.softmax(attn, axis=-1)
    y = (attn @ v).transpose(0, 2, 1, 3).reshape(B, N, C)
    return y @ wp.T + bp


if __name__ == "__main__":
    # dim=128, num_heads=8 -> head_dim=16; seq N=8, batch B=2.
    # (C chosen as a multiple of 128 so the I/O blocks are lane-dense.)
    B, N, C, H = 2, 8, 128, 8

    key = jax.random.PRNGKey(0)
    k_x, k_wqkv, k_wp, k_bp = jax.random.split(key, 4)

    x = jax.random.normal(k_x, (B, N, C), dtype=jnp.float32)

    winit = 1.0 / jnp.sqrt(jnp.float32(C))
    wqkv = jax.random.normal(k_wqkv, (3 * C, C), dtype=jnp.float32) * winit  # qkv_bias=False
    wp = jax.random.normal(k_wp, (C, C), dtype=jnp.float32) * winit
    bp = jax.random.normal(k_bp, (C,), dtype=jnp.float32) * 0.1

    # One-time weight prep (hoisted out of the forward -- feedback item).
    wqkv_h, wp_h, bp2 = prepare_params(wqkv, wp, bp, H)

    y = attention_forward(x, wqkv_h, wp_h, bp2, H)
    jax.block_until_ready(y)

    y_ref = attention_ref(x, wqkv, wp, bp, H)

    assert y.shape == (B, N, C)
    # bf16 MXU operands vs f32 reference -> loosened tolerance.
    err = float(jnp.max(jnp.abs(y - y_ref)))
    assert jnp.allclose(y, y_ref, atol=5e-2, rtol=5e-2), err

    print("KERNEL_OK")
</pallas_src>

<mosaic_0001>
module attributes {stable_mosaic.version = 11 : i64} {
  func.func @_mhsa_kernel(%arg0: i32, %arg1: memref<16x128xf32, #tpu.memory_space<vmem>>, %arg2: memref<8x128x48xbf16, #tpu.memory_space<vmem>>, %arg3: memref<8x16x128xbf16, #tpu.memory_space<vmem>>, %arg4: memref<1x128xf32, #tpu.memory_space<vmem>>, %arg5: memref<16x128xf32, #tpu.memory_space<vmem>>) attributes {dimension_semantics = [#tpu.dimension_semantics<parallel>], iteration_bounds = array<i64: 1>, scalar_prefetch = 0 : i64, scratch_operands = 0 : i64, tpu.core_type = #tpu.core_type<tc>, window_params = [{transform_indices = @transform_0, window_bounds = array<i64: 16, 128>}, {pipeline_mode = #tpu.pipeline_mode<synchronous>, transform_indices = @transform_1, window_bounds = array<i64: 8, 128, 48>}, {pipeline_mode = #tpu.pipeline_mode<synchronous>, transform_indices = @transform_2, window_bounds = array<i64: 8, 16, 128>}, {pipeline_mode = #tpu.pipeline_mode<synchronous>, transform_indices = @transform_3, window_bounds = array<i64: 1, 128>}, {transform_indices = @transform_4, window_bounds = array<i64: 16, 128>}]} {
    %c0 = arith.constant 0 : index
    %c0_0 = arith.constant 0 : index
    %0 = vector.load %arg1[%c0, %c0_0] : memref<16x128xf32, #tpu.memory_space<vmem>>, vector<16x128xf32>
    %1 = arith.truncf %0 : vector<16x128xf32> to vector<16x128xbf16>
    %2 = vector.shape_cast %1 : vector<16x128xbf16> to vector<1x16x128xbf16>
    %3 = vector.broadcast %2 : vector<1x16x128xbf16> to vector<8x16x128xbf16>
    %c0_1 = arith.constant 0 : index
    %c0_2 = arith.constant 0 : index
    %c0_3 = arith.constant 0 : index
    %4 = vector.load %arg2[%c0_1, %c0_2, %c0_3] : memref<8x128x48xbf16, #tpu.memory_space<vmem>>, vector<8x128x48xbf16>
    "tpu.trace_start"() <{level = 10 : i32, message = "htc,hce->hte"}> : () -> ()
    %cst = arith.constant dense<0.000000e+00> : vector<8x16x48xf32>
    %5 = tpu.matmul %3, %4, %cst {dimension_numbers = #tpu.dot_dimension_numbers<[2], [1], [1], [2], [0, 0, 0, 1, 1, 2], [0], [0]>} : vector<8x16x128xbf16>, vector<8x128x48xbf16>, vector<8x16x48xf32> -> vector<8x16x48xf32>
    "tpu.trace_stop"() : () -> ()
    %6 = arith.truncf %5 : vector<8x16x48xf32> to vector<8x16x48xbf16>
    %7 = vector.extract_strided_slice %6 {offsets = [0, 0, 0], sizes = [8, 16, 16], strides = [1, 1, 1]} : vector<8x16x48xbf16> to vector<8x16x16xbf16>
    %8 = vector.extract_strided_slice %6 {offsets = [0, 0, 16], sizes = [8, 16, 16], strides = [1, 1, 1]} : vector<8x16x48xbf16> to vector<8x16x16xbf16>
    %9 = vector.extract_strided_slice %6 {offsets = [0, 0, 32], sizes = [8, 16, 16], strides = [1, 1, 1]} : vector<8x16x48xbf16> to vector<8x16x16xbf16>
    %10 = vector.extract_strided_slice %7 {offsets = [0, 0, 0], sizes = [8, 8, 16], strides = [1, 1, 1]} : vector<8x16x16xbf16> to vector<8x8x16xbf16>
    %11 = vector.extract_strided_slice %8 {offsets = [0, 0, 0], sizes = [8, 8, 16], strides = [1, 1, 1]} : vector<8x16x16xbf16> to vector<8x8x16xbf16>
    %12 = vector.extract_strided_slice %9 {offsets = [0, 0, 0], sizes = [8, 8, 16], strides = [1, 1, 1]} : vector<8x16x16xbf16> to vector<8x8x16xbf16>
    "tpu.trace_start"() <{level = 10 : i32, message = "hnd,hmd->hnm"}> : () -> ()
    %cst_4 = arith.constant dense<0.000000e+00> : vector<8x8x8xf32>
    %13 = tpu.matmul %10, %11, %cst_4 {dimension_numbers = #tpu.dot_dimension_numbers<[2], [2], [1], [1], [0, 0, 0, 1, 1, 1], [0], [0]>} : vector<8x8x16xbf16>, vector<8x8x16xbf16>, vector<8x8x8xf32> -> vector<8x8x8xf32>
    "tpu.trace_stop"() : () -> ()
    %cst_5 = arith.constant dense<0xFF800000> : vector<8x8xf32>
    %14 = vector.multi_reduction <maximumf>, %13, %cst_5 [2] : vector<8x8x8xf32> to vector<8x8xf32>
    %15 = vector.shape_cast %14 : vector<8x8xf32> to vector<8x8x1xf32>
    %16 = vector.broadcast %15 : vector<8x8x1xf32> to vector<8x8x8xf32>
    %17 = arith.subf %13, %16 : vector<8x8x8xf32>
    %18 = math.exp %17 : vector<8x8x8xf32>
    %cst_6 = arith.constant dense<0.000000e+00> : vector<8x8xf32>
    %19 = vector.multi_reduction <add>, %18, %cst_6 [2] : vector<8x8x8xf32> to vector<8x8xf32>
    %20 = vector.shape_cast %19 : vector<8x8xf32> to vector<8x8x1xf32>
    %21 = tpu.reciprocal %20 : vector<8x8x1xf32> -> vector<8x8x1xf32>
    %22 = vector.broadcast %21 : vector<8x8x1xf32> to vector<8x8x8xf32>
    %23 = arith.mulf %18, %22 : vector<8x8x8xf32>
    %24 = arith.truncf %23 : vector<8x8x8xf32> to vector<8x8x8xbf16>
    "tpu.trace_start"() <{level = 10 : i32, message = "hnm,hmd->hnd"}> : () -> ()
    %cst_7 = arith.constant dense<0.000000e+00> : vector<8x8x16xf32>
    %25 = tpu.matmul %24, %12, %cst_7 {dimension_numbers = #tpu.dot_dimension_numbers<[2], [1], [1], [2], [0, 0, 0, 1, 1, 2], [0], [0]>} : vector<8x8x8xbf16>, vector<8x8x16xbf16>, vector<8x8x16xf32> -> vector<8x8x16xf32>
    "tpu.trace_stop"() : () -> ()
    %26 = vector.extract_strided_slice %7 {offsets = [0, 8, 0], sizes = [8, 8, 16], strides = [1, 1, 1]} : vector<8x16x16xbf16> to vector<8x8x16xbf16>
    %27 = vector.extract_strided_slice %8 {offsets = [0, 8, 0], sizes = [8, 8, 16], strides = [1, 1, 1]} : vector<8x16x16xbf16> to vector<8x8x16xbf16>
    %28 = vector.extract_strided_slice %9 {offsets = [0, 8, 0], sizes = [8, 8, 16], strides = [1, 1, 1]} : vector<8x16x16xbf16> to vector<8x8x16xbf16>
    "tpu.trace_start"() <{level = 10 : i32, message = "hnd,hmd->hnm"}> : () -> ()
    %cst_8 = arith.constant dense<0.000000e+00> : vector<8x8x8xf32>
    %29 = tpu.matmul %26, %27, %cst_8 {dimension_numbers = #tpu.dot_dimension_numbers<[2], [2], [1], [1], [0, 0, 0, 1, 1, 1], [0], [0]>} : vector<8x8x16xbf16>, vector<8x8x16xbf16>, vector<8x8x8xf32> -> vector<8x8x8xf32>
    "tpu.trace_stop"() : () -> ()
    %cst_9 = arith.constant dense<0xFF800000> : vector<8x8xf32>
    %30 = vector.multi_reduction <maximumf>, %29, %cst_9 [2] : vector<8x8x8xf32> to vector<8x8xf32>
    %31 = vector.shape_cast %30 : vector<8x8xf32> to vector<8x8x1xf32>
    %32 = vector.broadcast %31 : vector<8x8x1xf32> to vector<8x8x8xf32>
    %33 = arith.subf %29, %32 : vector<8x8x8xf32>
    %34 = math.exp %33 : vector<8x8x8xf32>
    %cst_10 = arith.constant dense<0.000000e+00> : vector<8x8xf32>
    %35 = vector.multi_reduction <add>, %34, %cst_10 [2] : vector<8x8x8xf32> to vector<8x8xf32>
    %36 = vector.shape_cast %35 : vector<8x8xf32> to vector<8x8x1xf32>
    %37 = tpu.reciprocal %36 : vector<8x8x1xf32> -> vector<8x8x1xf32>
    %38 = vector.broadcast %37 : vector<8x8x1xf32> to vector<8x8x8xf32>
    %39 = arith.mulf %34, %38 : vector<8x8x8xf32>
    %40 = arith.truncf %39 : vector<8x8x8xf32> to vector<8x8x8xbf16>
    "tpu.trace_start"() <{level = 10 : i32, message = "hnm,hmd->hnd"}> : () -> ()
    %cst_11 = arith.constant dense<0.000000e+00> : vector<8x8x16xf32>
    %41 = tpu.matmul %40, %28, %cst_11 {dimension_numbers = #tpu.dot_dimension_numbers<[2], [1], [1], [2], [0, 0, 0, 1, 1, 2], [0], [0]>} : vector<8x8x8xbf16>, vector<8x8x16xbf16>, vector<8x8x16xf32> -> vector<8x8x16xf32>
    "tpu.trace_stop"() : () -> ()
    %42 = tpu.concatenate %25, %41 in 1 : vector<8x8x16xf32>, vector<8x8x16xf32> -> vector<8x16x16xf32>
    %43 = arith.truncf %42 : vector<8x16x16xf32> to vector<8x16x16xbf16>
    %c0_12 = arith.constant 0 : index
    %c0_13 = arith.constant 0 : index
    %c0_14 = arith.constant 0 : index
    %44 = vector.load %arg3[%c0_12, %c0_13, %c0_14] : memref<8x16x128xbf16, #tpu.memory_space<vmem>>, vector<8x16x128xbf16>
    "tpu.trace_start"() <{level = 10 : i32, message = "htd,hdc->htc"}> : () -> ()
    %cst_15 = arith.constant dense<0.000000e+00> : vector<8x16x128xf32>
    %45 = tpu.matmul %43, %44, %cst_15 {dimension_numbers = #tpu.dot_dimension_numbers<[2], [1], [1], [2], [0, 0, 0, 1, 1, 2], [0], [0]>} : vector<8x16x16xbf16>, vector<8x16x128xbf16>, vector<8x16x128xf32> -> vector<8x16x128xf32>
    "tpu.trace_stop"() : () -> ()
    %cst_16 = arith.constant dense<0.000000e+00> : vector<16x128xf32>
    %46 = vector.multi_reduction <add>, %45, %cst_16 [0] : vector<8x16x128xf32> to vector<16x128xf32>
    %c0_17 = arith.constant 0 : index
    %c0_18 = arith.constant 0 : index
    %47 = vector.load %arg4[%c0_17, %c0_18] : memref<1x128xf32, #tpu.memory_space<vmem>>, vector<1x128xf32>
    %48 = vector.broadcast %47 : vector<1x128xf32> to vector<16x128xf32>
    %49 = arith.addf %46, %48 : vector<16x128xf32>
    %c0_19 = arith.constant 0 : index
    %c0_20 = arith.constant 0 : index
    %50 = vector.load %arg5[%c0_19, %c0_20] : memref<16x128xf32, #tpu.memory_space<vmem>>, vector<16x128xf32>
    tpu.vector_store %arg5[%c0_19, %c0_20], %49 {strides = array<i32>} : memref<16x128xf32, #tpu.memory_space<vmem>>, vector<16x128xf32>,
    return
  }
  func.func @transform_0(%arg0: i32) -> (i32, i32) {
    %c0_i32 = arith.constant 0 : i32
    %c0_i32_0 = arith.constant 0 : i32
    return %arg0, %c0_i32 : i32, i32
  }
  func.func @transform_1(%arg0: i32) -> (i32, i32, i32) {
    %c0_i32 = arith.constant 0 : i32
    %c0_i32_0 = arith.constant 0 : i32
    %c0_i32_1 = arith.constant 0 : i32
    %c0_i32_2 = arith.constant 0 : i32
    return %c0_i32, %c0_i32_0, %c0_i32_1 : i32, i32, i32
  }
  func.func @transform_2(%arg0: i32) -> (i32, i32, i32) {
    %c0_i32 = arith.constant 0 : i32
    %c0_i32_0 = arith.constant 0 : i32
    %c0_i32_1 = arith.constant 0 : i32
    %c0_i32_2 = arith.constant 0 : i32
    return %c0_i32, %c0_i32_0, %c0_i32_1 : i32, i32, i32
  }
  func.func @transform_3(%arg0: i32) -> (i32, i32) {
    %c0_i32 = arith.constant 0 : i32
    %c0_i32_0 = arith.constant 0 : i32
    %c0_i32_1 = arith.constant 0 : i32
    return %c0_i32, %c0_i32_0 : i32, i32
  }
  func.func @transform_4(%arg0: i32) -> (i32, i32) {
    %c0_i32 = arith.constant 0 : i32
    %c0_i32_0 = arith.constant 0 : i32
    return %arg0, %c0_i32 : i32, i32
  }
}

</mosaic_0001>

<llo_original>
// kernel: tpu_custom_call.1
$region0: #{tpu_custom_call.1}
  #allocation0 [shape = 'u32[]', space=smem, size = 0x4, offset = 0x4, fixed_abs, tag = 'smem constant byte address 0x4 - core index']
  #allocation1 [shape = 'u32[144,128]{1,0:T(1,128)}', space=vmem, size = 0x12000, scoped, tag = 'internal scratch']
  %s0 = inlined_call_operand.vmem [shape: f32[16,128], index: 0, kind: input, shape index: {}]
  %s1 = inlined_call_operand.vmem [shape: bf16[8,128,48], index: 1, kind: input, shape index: {}]
  %s2 = inlined_call_operand.vmem [shape: bf16[8,16,128], index: 2, kind: input, shape index: {}]
  %s3 = inlined_call_operand.vmem [shape: f32[1,128], index: 3, kind: input, shape index: {}]
  %s4 = inlined_call_operand.hbm [shape: f32[16,128], index: 4, kind: output, shape index: {}]
  %s5 = sld [smem:[#allocation0]]
  $region26: #{tpu_custom_call.1} parent=0
    _
  %s7 = ssub.s32 1, %s5
  %s8 = scalar_select 0, %s7, %s5
  $region1: #{tpu_custom_call.1} parent=0
    #allocation2 [shape = 'u8[8192]{0}', space=vmem, size = 0x2000, scoped, tag = 'output window, operand 0, single buffered']
    #allocation3 [shape = 's32[1]{0}', space=sflag, size = 0x4, scoped, tag = 'scoped memory for tpu_custom_call.1']
    %9 = vsyncpa [#allocation3], 0
    // Predicated region
    $region2: #{tpu_custom_call.1} parent=1 // pred_check
      _
    $region3: #{tpu_custom_call.1} parent=1 // pred_check_branch
      %11 = sbr.rel (0) target = $region5
    $region4: #{tpu_custom_call.1} parent=1 // pred_region
      _
    $region5: #{tpu_custom_call.1} parent=1 // pred_fallthru
      _
    // Predicated region
    $region6: #{tpu_custom_call.1} parent=1 // pred_check
      _
    $region7: #{tpu_custom_call.1} parent=1 // pred_check_branch
      %13 = sbr.rel (0) target = $region9
    $region8: #{tpu_custom_call.1} parent=1 // pred_region
      _
    $region9: #{tpu_custom_call.1} parent=1 // pred_fallthru
      _
    // Predicated region
    $region10: #{tpu_custom_call.1} parent=1 // pred_check
      _
    $region11: #{tpu_custom_call.1} parent=1 // pred_check_branch
      %15 = sbr.rel (0) target = $region13
    $region12: #{tpu_custom_call.1} parent=1 // pred_region
      _
    $region13: #{tpu_custom_call.1} parent=1 // pred_fallthru
      _
    // Predicated region
    $region14: #{tpu_custom_call.1} parent=1 // pred_check
      _
    $region15: #{tpu_custom_call.1} parent=1 // pred_check_branch
      %17 = sbr.rel (0) target = $region17
    $region16: #{tpu_custom_call.1} parent=1 // pred_region
      _
    $region17: #{tpu_custom_call.1} parent=1 // pred_fallthru
      _
    %v19 = vld [vmem:[%s0] sm:$0xff]
    %v20 = vld [vmem:[%s0 + $0x8] sm:$0xff]
    %v21 = vpack.c.bf16 %v20, %v19
    %v22 = vld [vmem:[%s1] sm:$0xf]
    %v23 = vld [vmem:[%s1 + $0x4] sm:$0xf]
    %v24 = vld [vmem:[%s1 + $0x8] sm:$0xf]
    %v25 = vld [vmem:[%s1 + $0xc] sm:$0xf]
    %v26 = vld [vmem:[%s1 + $0x10] sm:$0xf]
    %v27 = vld [vmem:[%s1 + $0x14] sm:$0xf]
    %v28 = vld [vmem:[%s1 + $0x18] sm:$0xf]
    %v29 = vld [vmem:[%s1 + $0x1c] sm:$0xf]
    %v30 = vld [vmem:[%s1 + $0x20] sm:$0xf]
    %v31 = vld [vmem:[%s1 + $0x24] sm:$0xf]
    %v32 = vld [vmem:[%s1 + $0x28] sm:$0xf]
    %v33 = vld [vmem:[%s1 + $0x2c] sm:$0xf]
    %v34 = vld [vmem:[%s1 + $0x30] sm:$0xf]
    %v35 = vld [vmem:[%s1 + $0x34] sm:$0xf]
    %v36 = vld [vmem:[%s1 + $0x38] sm:$0xf]
    %v37 = vld [vmem:[%s1 + $0x3c] sm:$0xf]
    %v38 = vld [vmem:[%s1 + $0x40] sm:$0xf]
    %v39 = vld [vmem:[%s1 + $0x44] sm:$0xf]
    %v40 = vld [vmem:[%s1 + $0x48] sm:$0xf]
    %v41 = vld [vmem:[%s1 + $0x4c] sm:$0xf]
    %v42 = vld [vmem:[%s1 + $0x50] sm:$0xf]
    %v43 = vld [vmem:[%s1 + $0x54] sm:$0xf]
    %v44 = vld [vmem:[%s1 + $0x58] sm:$0xf]
    %v45 = vld [vmem:[%s1 + $0x5c] sm:$0xf]
    %v46 = vld [vmem:[%s1 + $0x60] sm:$0xf]
    %v47 = vld [vmem:[%s1 + $0x64] sm:$0xf]
    %v48 = vld [vmem:[%s1 + $0x68] sm:$0xf]
    %v49 = vld [vmem:[%s1 + $0x6c] sm:$0xf]
    %v50 = vld [vmem:[%s1 + $0x70] sm:$0xf]
    %v51 = vld [vmem:[%s1 + $0x74] sm:$0xf]
    %v52 = vld [vmem:[%s1 + $0x78] sm:$0xf]
    %v53 = vld [vmem:[%s1 + $0x7c] sm:$0xf]
    %v54 = vld [vmem:[%s1 + $0x80] sm:$0xf]
    %v55 = vld [vmem:[%s1 + $0x84] sm:$0xf]
    %v56 = vld [vmem:[%s1 + $0x88] sm:$0xf]
    %v57 = vld [vmem:[%s1 + $0x8c] sm:$0xf]
    %v58 = vld [vmem:[%s1 + $0x90] sm:$0xf]
    %v59 = vld [vmem:[%s1 + $0x94] sm:$0xf]
    %v60 = vld [vmem:[%s1 + $0x98] sm:$0xf]
    %v61 = vld [vmem:[%s1 + $0x9c] sm:$0xf]
    %v62 = vld [vmem:[%s1 + $0xa0] sm:$0xf]
    %v63 = vld [vmem:[%s1 + $0xa4] sm:$0xf]
    %v64 = vld [vmem:[%s1 + $0xa8] sm:$0xf]
    %v65 = vld [vmem:[%s1 + $0xac] sm:$0xf]
    %v66 = vld [vmem:[%s1 + $0xb0] sm:$0xf]
    %v67 = vld [vmem:[%s1 + $0xb4] sm:$0xf]
    %v68 = vld [vmem:[%s1 + $0xb8] sm:$0xf]
    %v69 = vld [vmem:[%s1 + $0xbc] sm:$0xf]
    %v70 = vld [vmem:[%s1 + $0xc0] sm:$0xf]
    %v71 = vld [vmem:[%s1 + $0xc4] sm:$0xf]
    %v72 = vld [vmem:[%s1 + $0xc8] sm:$0xf]
    %v73 = vld [vmem:[%s1 + $0xcc] sm:$0xf]
    %v74 = vld [vmem:[%s1 + $0xd0] sm:$0xf]
    %v75 = vld [vmem:[%s1 + $0xd4] sm:$0xf]
    %v76 = vld [vmem:[%s1 + $0xd8] sm:$0xf]
    %v77 = vld [vmem:[%s1 + $0xdc] sm:$0xf]
    %v78 = vld [vmem:[%s1 + $0xe0] sm:$0xf]
    %v79 = vld [vmem:[%s1 + $0xe4] sm:$0xf]
    %v80 = vld [vmem:[%s1 + $0xe8] sm:$0xf]
    %v81 = vld [vmem:[%s1 + $0xec] sm:$0xf]
    %v82 = vld [vmem:[%s1 + $0xf0] sm:$0xf]
    %v83 = vld [vmem:[%s1 + $0xf4] sm:$0xf]
    %v84 = vld [vmem:[%s1 + $0xf8] sm:$0xf]
    %v85 = vld [vmem:[%s1 + $0xfc] sm:$0xf]
    %v86 = vld [vmem:[%s1 + $0x100] sm:$0xf]
    %v87 = vld [vmem:[%s1 + $0x104] sm:$0xf]
    %v88 = vld [vmem:[%s1 + $0x108] sm:$0xf]
    %v89 = vld [vmem:[%s1 + $0x10c] sm:$0xf]
    %v90 = vld [vmem:[%s1 + $0x110] sm:$0xf]
    %v91 = vld [vmem:[%s1 + $0x114] sm:$0xf]
    %v92 = vld [vmem:[%s1 + $0x118] sm:$0xf]
    %v93 = vld [vmem:[%s1 + $0x11c] sm:$0xf]
    %v94 = vld [vmem:[%s1 + $0x120] sm:$0xf]
    %v95 = vld [vmem:[%s1 + $0x124] sm:$0xf]
    %v96 = vld [vmem:[%s1 + $0x128] sm:$0xf]
    %v97 = vld [vmem:[%s1 + $0x12c] sm:$0xf]
    %v98 = vld [vmem:[%s1 + $0x130] sm:$0xf]
    %v99 = vld [vmem:[%s1 + $0x134] sm:$0xf]
    %v100 = vld [vmem:[%s1 + $0x138] sm:$0xf]
    %v101 = vld [vmem:[%s1 + $0x13c] sm:$0xf]
    %v102 = vld [vmem:[%s1 + $0x140] sm:$0xf]
    %v103 = vld [vmem:[%s1 + $0x144] sm:$0xf]
    %v104 = vld [vmem:[%s1 + $0x148] sm:$0xf]
    %v105 = vld [vmem:[%s1 + $0x14c] sm:$0xf]
    %v106 = vld [vmem:[%s1 + $0x150] sm:$0xf]
    %v107 = vld [vmem:[%s1 + $0x154] sm:$0xf]
    %v108 = vld [vmem:[%s1 + $0x158] sm:$0xf]
    %v109 = vld [vmem:[%s1 + $0x15c] sm:$0xf]
    %v110 = vld [vmem:[%s1 + $0x160] sm:$0xf]
    %v111 = vld [vmem:[%s1 + $0x164] sm:$0xf]
    %v112 = vld [vmem:[%s1 + $0x168] sm:$0xf]
    %v113 = vld [vmem:[%s1 + $0x16c] sm:$0xf]
    %v114 = vld [vmem:[%s1 + $0x170] sm:$0xf]
    %v115 = vld [vmem:[%s1 + $0x174] sm:$0xf]
    %v116 = vld [vmem:[%s1 + $0x178] sm:$0xf]
    %v117 = vld [vmem:[%s1 + $0x17c] sm:$0xf]
    %v118 = vld [vmem:[%s1 + $0x180] sm:$0xf]
    %v119 = vld [vmem:[%s1 + $0x184] sm:$0xf]
    %v120 = vld [vmem:[%s1 + $0x188] sm:$0xf]
    %v121 = vld [vmem:[%s1 + $0x18c] sm:$0xf]
    %v122 = vld [vmem:[%s1 + $0x190] sm:$0xf]
    %v123 = vld [vmem:[%s1 + $0x194] sm:$0xf]
    %v124 = vld [vmem:[%s1 + $0x198] sm:$0xf]
    %v125 = vld [vmem:[%s1 + $0x19c] sm:$0xf]
    %v126 = vld [vmem:[%s1 + $0x1a0] sm:$0xf]
    %v127 = vld [vmem:[%s1 + $0x1a4] sm:$0xf]
    %v128 = vld [vmem:[%s1 + $0x1a8] sm:$0xf]
    %v129 = vld [vmem:[%s1 + $0x1ac] sm:$0xf]
    %v130 = vld [vmem:[%s1 + $0x1b0] sm:$0xf]
    %v131 = vld [vmem:[%s1 + $0x1b4] sm:$0xf]
    %v132 = vld [vmem:[%s1 + $0x1b8] sm:$0xf]
    %v133 = vld [vmem:[%s1 + $0x1bc] sm:$0xf]
    %v134 = vld [vmem:[%s1 + $0x1c0] sm:$0xf]
    %v135 = vld [vmem:[%s1 + $0x1c4] sm:$0xf]
    %v136 = vld [vmem:[%s1 + $0x1c8] sm:$0xf]
    %v137 = vld [vmem:[%s1 + $0x1cc] sm:$0xf]
    %v138 = vld [vmem:[%s1 + $0x1d0] sm:$0xf]
    %v139 = vld [vmem:[%s1 + $0x1d4] sm:$0xf]
    %v140 = vld [vmem:[%s1 + $0x1d8] sm:$0xf]
    %v141 = vld [vmem:[%s1 + $0x1dc] sm:$0xf]
    %v142 = vld [vmem:[%s1 + $0x1e0] sm:$0xf]
    %v143 = vld [vmem:[%s1 + $0x1e4] sm:$0xf]
    %v144 = vld [vmem:[%s1 + $0x1e8] sm:$0xf]
    %v145 = vld [vmem:[%s1 + $0x1ec] sm:$0xf]
    %v146 = vld [vmem:[%s1 + $0x1f0] sm:$0xf]
    %v147 = vld [vmem:[%s1 + $0x1f4] sm:$0xf]
    %v148 = vld [vmem:[%s1 + $0x1f8] sm:$0xf]
    %v149 = vld [vmem:[%s1 + $0x1fc] sm:$0xf]
    %v166 = vunpack.c.l.b16 %v22
    %v167 = vunpack.c.l.b16 %v23
    %v168 = vunpack.c.l.b16 %v24
    %v169 = vunpack.c.l.b16 %v25
    %v170 = vunpack.c.l.b16 %v26
    %v171 = vunpack.c.l.b16 %v27
    %v172 = vunpack.c.l.b16 %v28
    %v173 = vunpack.c.l.b16 %v29
    %v174 = vunpack.c.l.b16 %v30
    %v175 = vunpack.c.l.b16 %v31
    %v176 = vunpack.c.l.b16 %v32
    %v177 = vunpack.c.l.b16 %v33
    %v178 = vunpack.c.l.b16 %v34
    %v179 = vunpack.c.l.b16 %v35
    %v180 = vunpack.c.l.b16 %v36
    %v181 = vunpack.c.l.b16 %v37
    %v182 = vpack.c.b16 %v167, %v166
    %v183 = vpack.c.b16 %v169, %v168
    %v184 = vpack.c.b16 %v171, %v170
    %v185 = vpack.c.b16 %v173, %v172
    %v186 = vpack.c.b16 %v175, %v174
    %v187 = vpack.c.b16 %v177, %v176
    %v188 = vpack.c.b16 %v179, %v178
    %v189 = vpack.c.b16 %v181, %v180
    %198 = vmatprep.subr.bf16.mxu0 0
    %199 = vmatpush1.bf16.msra.mxu0 %v182
    %200 = vmatprep.subr.bf16.mxu0 0
    %201 = vmatpush1.bf16.msra.mxu0 %v183
    %202 = vmatprep.subr.bf16.mxu0 0
    %203 = vmatpush1.bf16.msra.mxu0 %v184
    %204 = vmatprep.subr.bf16.mxu0 0
    %205 = vmatpush1.bf16.msra.mxu0 %v185
    %206 = vmatprep.subr.bf16.mxu0 0
    %207 = vmatpush1.bf16.msra.mxu0 %v186
    %208 = vmatprep.subr.bf16.mxu0 0
    %209 = vmatpush1.bf16.msra.mxu0 %v187
    %210 = vmatprep.subr.bf16.mxu0 0
    %211 = vmatpush1.bf16.msra.mxu0 %v188
    %212 = vmatprep.subr.bf16.mxu0 0
    %213 = vmatpush1.bf16.msra.mxu0 %v189
    %214 = vmatprep.subr.bf16.mxu0 0
    %215 = vmatpush1.bf16.msra.mxu0 0
    %216 = vmatprep.subr.bf16.mxu0 0
    %217 = vmatpush1.bf16.msra.mxu0 0
    %218 = vmatprep.subr.bf16.mxu0 0
    %219 = vmatpush1.bf16.msra.mxu0 0
    %220 = vmatprep.subr.bf16.mxu0 0
    %221 = vmatpush1.bf16.msra.mxu0 0
    %222 = vmatprep.subr.bf16.mxu0 0
    %223 = vmatpush1.bf16.msra.mxu0 0
    %224 = vmatprep.subr.bf16.mxu0 0
    %225 = vmatpush1.bf16.msra.mxu0 0
    %226 = vmatprep.subr.bf16.mxu0 0
    %227 = vmatpush1.bf16.msra.mxu0 0
    %228 = vmatprep.subr.bf16.mxu0 0
    %229 = vmatpush1.bf16.msra.mxu0 0
    %230 = vmatprep.mubr.bf16.mxu0 0
    %231 = vmatmul.mubr.bf16.gmra.mrb[0].mxu0 %v21
    %v232 = vpop.f32.mrb[0].mxu0
    %v233 = vadd.f32 0.0, %v232
    %v234 = vpop.f32.mrb[0].mxu0
    %v235 = vpop.f32.mrb[0].mxu0
    %v236 = vadd.f32 0.0, %v235
    %v237 = vpop.f32.mrb[0].mxu0
    %238 = vdwg.mxu0
    %v255 = vunpack.c.l.b16 %v38
    %v256 = vunpack.c.l.b16 %v39
    %v257 = vunpack.c.l.b16 %v40
    %v258 = vunpack.c.l.b16 %v41
    %v259 = vunpack.c.l.b16 %v42
    %v260 = vunpack.c.l.b16 %v43
    %v261 = vunpack.c.l.b16 %v44
    %v262 = vunpack.c.l.b16 %v45
    %v263 = vunpack.c.l.b16 %v46
    %v264 = vunpack.c.l.b16 %v47
    %v265 = vunpack.c.l.b16 %v48
    %v266 = vunpack.c.l.b16 %v49
    %v267 = vunpack.c.l.b16 %v50
    %v268 = vunpack.c.l.b16 %v51
    %v269 = vunpack.c.l.b16 %v52
    %v270 = vunpack.c.l.b16 %v53
    %v271 = vpack.c.b16 %v256, %v255
    %v272 = vpack.c.b16 %v258, %v257
    %v273 = vpack.c.b16 %v260, %v259
    %v274 = vpack.c.b16 %v262, %v261
    %v275 = vpack.c.b16 %v264, %v263
    %v276 = vpack.c.b16 %v266, %v265
    %v277 = vpack.c.b16 %v268, %v267
    %v278 = vpack.c.b16 %v270, %v269
    %287 = vmatprep.subr.bf16.mxu0 0
    %288 = vmatpush1.bf16.msra.mxu0 %v271
    %289 = vmatprep.subr.bf16.mxu0 0
    %290 = vmatpush1.bf16.msra.mxu0 %v272
    %291 = vmatprep.subr.bf16.mxu0 0
    %292 = vmatpush1.bf16.msra.mxu0 %v273
    %293 = vmatprep.subr.bf16.mxu0 0
    %294 = vmatpush1.bf16.msra.mxu0 %v274
    %295 = vmatprep.subr.bf16.mxu0 0
    %296 = vmatpush1.bf16.msra.mxu0 %v275
    %297 = vmatprep.subr.bf16.mxu0 0
    %298 = vmatpush1.bf16.msra.mxu0 %v276
    %299 = vmatprep.subr.bf16.mxu0 0
    %300 = vmatpush1.bf16.msra.mxu0 %v277
    %301 = vmatprep.subr.bf16.mxu0 0
    %302 = vmatpush1.bf16.msra.mxu0 %v278
    %303 = vmatprep.subr.bf16.mxu0 0
    %304 = vmatpush1.bf16.msra.mxu0 0
    %305 = vmatprep.subr.bf16.mxu0 0
    %306 = vmatpush1.bf16.msra.mxu0 0
    %307 = vmatprep.subr.bf16.mxu0 0
    %308 = vmatpush1.bf16.msra.mxu0 0
    %309 = vmatprep.subr.bf16.mxu0 0
    %310 = vmatpush1.bf16.msra.mxu0 0
    %311 = vmatprep.subr.bf16.mxu0 0
    %312 = vmatpush1.bf16.msra.mxu0 0
    %313 = vmatprep.subr.bf16.mxu0 0
    %314 = vmatpush1.bf16.msra.mxu0 0
    %315 = vmatprep.subr.bf16.mxu0 0
    %316 = vmatpush1.bf16.msra.mxu0 0
    %317 = vmatprep.subr.bf16.mxu0 0
    %318 = vmatpush1.bf16.msra.mxu0 0
    %319 = vmatprep.mubr.bf16.mxu0 0
    %320 = vmatmul.mubr.bf16.gmra.mrb[0].mxu0 %v21
    %v321 = vpop.f32.mrb[0].mxu0
    %v322 = vadd.f32 0.0, %v321
    %v323 = vpop.f32.mrb[0].mxu0
    %v324 = vpop.f32.mrb[0].mxu0
    %v325 = vadd.f32 0.0, %v324
    %v326 = vpop.f32.mrb[0].mxu0
    %327 = vdwg.mxu0
    %v344 = vunpack.c.l.b16 %v54
    %v345 = vunpack.c.l.b16 %v55
    %v346 = vunpack.c.l.b16 %v56
    %v347 = vunpack.c.l.b16 %v57
    %v348 = vunpack.c.l.b16 %v58
    %v349 = vunpack.c.l.b16 %v59
    %v350 = vunpack.c.l.b16 %v60
    %v351 = vunpack.c.l.b16 %v61
    %v352 = vunpack.c.l.b16 %v62
    %v353 = vunpack.c.l.b16 %v63
    %v354 = vunpack.c.l.b16 %v64
    %v355 = vunpack.c.l.b16 %v65
    %v356 = vunpack.c.l.b16 %v66
    %v357 = vunpack.c.l.b16 %v67
    %v358 = vunpack.c.l.b16 %v68
    %v359 = vunpack.c.l.b16 %v69
    %v360 = vpack.c.b16 %v345, %v344
    %v361 = vpack.c.b16 %v347, %v346
    %v362 = vpack.c.b16 %v349, %v348
    %v363 = vpack.c.b16 %v351, %v350
    %v364 = vpack.c.b16 %v353, %v352
    %v365 = vpack.c.b16 %v355, %v354
    %v366 = vpack.c.b16 %v357, %v356
    %v367 = vpack.c.b16 %v359, %v358
    %376 = vmatprep.subr.bf16.mxu0 0
    %377 = vmatpush1.bf16.msra.mxu0 %v360
    %378 = vmatprep.subr.bf16.mxu0 0
    %379 = vmatpush1.bf16.msra.mxu0 %v361
    %380 = vmatprep.subr.bf16.mxu0 0
    %381 = vmatpush1.bf16.msra.mxu0 %v362
    %382 = vmatprep.subr.bf16.mxu0 0
    %383 = vmatpush1.bf16.msra.mxu0 %v363
    %384 = vmatprep.subr.bf16.mxu0 0
    %385 = vmatpush1.bf16.msra.mxu0 %v364
    %386 = vmatprep.subr.bf16.mxu0 0
    %387 = vmatpush1.bf16.msra.mxu0 %v365
    %388 = vmatprep.subr.bf16.mxu0 0
    %389 = vmatpush1.bf16.msra.mxu0 %v366
    %390 = vmatprep.subr.bf16.mxu0 0
    %391 = vmatpush1.bf16.msra.mxu0 %v367
    %392 = vmatprep.subr.bf16.mxu0 0
    %393 = vmatpush1.bf16.msra.mxu0 0
    %394 = vmatprep.subr.bf16.mxu0 0
    %395 = vmatpush1.bf16.msra.mxu0 0
    %396 = vmatprep.subr.bf16.mxu0 0
    %397 = vmatpush1.bf16.msra.mxu0 0
    %398 = vmatprep.subr.bf16.mxu0 0
    %399 = vmatpush1.bf16.msra.mxu0 0
    %400 = vmatprep.subr.bf16.mxu0 0
    %401 = vmatpush1.bf16.msra.mxu0 0
    %402 = vmatprep.subr.bf16.mxu0 0
    %403 = vmatpush1.bf16.msra.mxu0 0
    %404 = vmatprep.subr.bf16.mxu0 0
    %405 = vmatpush1.bf16.msra.mxu0 0
    %406 = vmatprep.subr.bf16.mxu0 0
    %407 = vmatpush1.bf16.msra.mxu0 0
    %408 = vmatprep.mubr.bf16.mxu0 0
    %409 = vmatmul.mubr.bf16.gmra.mrb[0].mxu0 %v21
    %v410 = vpop.f32.mrb[0].mxu0
    %v411 = vadd.f32 0.0, %v410
    %v412 = vpop.f32.mrb[0].mxu0
    %v413 = vpop.f32.mrb[0].mxu0
    %v414 = vadd.f32 0.0, %v413
    %v415 = vpop.f32.mrb[0].mxu0
    %416 = vdwg.mxu0
    %v433 = vunpack.c.l.b16 %v70
    %v434 = vunpack.c.l.b16 %v71
    %v435 = vunpack.c.l.b16 %v72
    %v436 = vunpack.c.l.b16 %v73
    %v437 = vunpack.c.l.b16 %v74
    %v438 = vunpack.c.l.b16 %v75
    %v439 = vunpack.c.l.b16 %v76
    %v440 = vunpack.c.l.b16 %v77
    %v441 = vunpack.c.l.b16 %v78
    %v442 = vunpack.c.l.b16 %v79
    %v443 = vunpack.c.l.b16 %v80
    %v444 = vunpack.c.l.b16 %v81
    %v445 = vunpack.c.l.b16 %v82
    %v446 = vunpack.c.l.b16 %v83
    %v447 = vunpack.c.l.b16 %v84
    %v448 = vunpack.c.l.b16 %v85
    %v449 = vpack.c.b16 %v434, %v433
    %v450 = vpack.c.b16 %v436, %v435
    %v451 = vpack.c.b16 %v438, %v437
    %v452 = vpack.c.b16 %v440, %v439
    %v453 = vpack.c.b16 %v442, %v441
    %v454 = vpack.c.b16 %v444, %v443
    %v455 = vpack.c.b16 %v446, %v445
    %v456 = vpack.c.b16 %v448, %v447
    %465 = vmatprep.subr.bf16.mxu0 0
    %466 = vmatpush1.bf16.msra.mxu0 %v449
    %467 = vmatprep.subr.bf16.mxu0 0
    %468 = vmatpush1.bf16.msra.mxu0 %v450
    %469 = vmatprep.subr.bf16.mxu0 0
    %470 = vmatpush1.bf16.msra.mxu0 %v451
    %471 = vmatprep.subr.bf16.mxu0 0
    %472 = vmatpush1.bf16.msra.mxu0 %v452
    %473 = vmatprep.subr.bf16.mxu0 0
    %474 = vmatpush1.bf16.msra.mxu0 %v453
    %475 = vmatprep.subr.bf16.mxu0 0
    %476 = vmatpush1.bf16.msra.mxu0 %v454
    %477 = vmatprep.subr.bf16.mxu0 0
    %478 = vmatpush1.bf16.msra.mxu0 %v455
    %479 = vmatprep.subr.bf16.mxu0 0
    %480 = vmatpush1.bf16.msra.mxu0 %v456
    %481 = vmatprep.subr.bf16.mxu0 0
    %482 = vmatpush1.bf16.msra.mxu0 0
    %483 = vmatprep.subr.bf16.mxu0 0
    %484 = vmatpush1.bf16.msra.mxu0 0
    %485 = vmatprep.subr.bf16.mxu0 0
    %486 = vmatpush1.bf16.msra.mxu0 0
    %487 = vmatprep.subr.bf16.mxu0 0
    %488 = vmatpush1.bf16.msra.mxu0 0
    %489 = vmatprep.subr.bf16.mxu0 0
    %490 = vmatpush1.bf16.msra.mxu0 0
    %491 = vmatprep.subr.bf16.mxu0 0
    %492 = vmatpush1.bf16.msra.mxu0 0
    %493 = vmatprep.subr.bf16.mxu0 0
    %494 = vmatpush1.bf16.msra.mxu0 0
    %495 = vmatprep.subr.bf16.mxu0 0
    %496 = vmatpush1.bf16.msra.mxu0 0
    %497 = vmatprep.mubr.bf16.mxu0 0
    %498 = vmatmul.mubr.bf16.gmra.mrb[0].mxu0 %v21
    %v499 = vpop.f32.mrb[0].mxu0
    %v500 = vadd.f32 0.0, %v499
    %v501 = vpop.f32.mrb[0].mxu0
    %v502 = vpop.f32.mrb[0].mxu0
    %v503 = vadd.f32 0.0, %v502
    %v504 = vpop.f32.mrb[0].mxu0
    %505 = vdwg.mxu0
    %v522 = vunpack.c.l.b16 %v86
    %v523 = vunpack.c.l.b16 %v87
    %v524 = vunpack.c.l.b16 %v88
    %v525 = vunpack.c.l.b16 %v89
    %v526 = vunpack.c.l.b16 %v90
    %v527 = vunpack.c.l.b16 %v91
    %v528 = vunpack.c.l.b16 %v92
    %v529 = vunpack.c.l.b16 %v93
    %v530 = vunpack.c.l.b16 %v94
    %v531 = vunpack.c.l.b16 %v95
    %v532 = vunpack.c.l.b16 %v96
    %v533 = vunpack.c.l.b16 %v97
    %v534 = vunpack.c.l.b16 %v98
    %v535 = vunpack.c.l.b16 %v99
    %v536 = vunpack.c.l.b16 %v100
    %v537 = vunpack.c.l.b16 %v101
    %v538 = vpack.c.b16 %v523, %v522
    %v539 = vpack.c.b16 %v525, %v524
    %v540 = vpack.c.b16 %v527, %v526
    %v541 = vpack.c.b16 %v529, %v528
    %v542 = vpack.c.b16 %v531, %v530
    %v543 = vpack.c.b16 %v533, %v532
    %v544 = vpack.c.b16 %v535, %v534
    %v545 = vpack.c.b16 %v537, %v536
    %554 = vmatprep.subr.bf16.mxu0 0
    %555 = vmatpush1.bf16.msra.mxu0 %v538
    %556 = vmatprep.subr.bf16.mxu0 0
    %557 = vmatpush1.bf16.msra.mxu0 %v539
    %558 = vmatprep.subr.bf16.mxu0 0
    %559 = vmatpush1.bf16.msra.mxu0 %v540
    %560 = vmatprep.subr.bf16.mxu0 0
    %561 = vmatpush1.bf16.msra.mxu0 %v541
    %562 = vmatprep.subr.bf16.mxu0 0
    %563 = vmatpush1.bf16.msra.mxu0 %v542
    %564 = vmatprep.subr.bf16.mxu0 0
    %565 = vmatpush1.bf16.msra.mxu0 %v543
    %566 = vmatprep.subr.bf16.mxu0 0
    %567 = vmatpush1.bf16.msra.mxu0 %v544
    %568 = vmatprep.subr.bf16.mxu0 0
    %569 = vmatpush1.bf16.msra.mxu0 %v545
    %570 = vmatprep.subr.bf16.mxu0 0
    %571 = vmatpush1.bf16.msra.mxu0 0
    %572 = vmatprep.subr.bf16.mxu0 0
    %573 = vmatpush1.bf16.msra.mxu0 0
    %574 = vmatprep.subr.bf16.mxu0 0
    %575 = vmatpush1.bf16.msra.mxu0 0
    %576 = vmatprep.subr.bf16.mxu0 0
    %577 = vmatpush1.bf16.msra.mxu0 0
    %578 = vmatprep.subr.bf16.mxu0 0
    %579 = vmatpush1.bf16.msra.mxu0 0
    %580 = vmatprep.subr.bf16.mxu0 0
    %581 = vmatpush1.bf16.msra.mxu0 0
    %582 = vmatprep.subr.bf16.mxu0 0
    %583 = vmatpush1.bf16.msra.mxu0 0
    %584 = vmatprep.subr.bf16.mxu0 0
    %585 = vmatpush1.bf16.msra.mxu0 0
    %586 = vmatprep.mubr.bf16.mxu0 0
    %587 = vmatmul.mubr.bf16.gmra.mrb[0].mxu0 %v21
    %v588 = vpop.f32.mrb[0].mxu0
    %v589 = vadd.f32 0.0, %v588
    %v590 = vpop.f32.mrb[0].mxu0
    %v591 = vpop.f32.mrb[0].mxu0
    %v592 = vadd.f32 0.0, %v591
    %v593 = vpop.f32.mrb[0].mxu0
    %594 = vdwg.mxu0
    %v611 = vunpack.c.l.b16 %v102
    %v612 = vunpack.c.l.b16 %v103
    %v613 = vunpack.c.l.b16 %v104
    %v614 = vunpack.c.l.b16 %v105
    %v615 = vunpack.c.l.b16 %v106
    %v616 = vunpack.c.l.b16 %v107
    %v617 = vunpack.c.l.b16 %v108
    %v618 = vunpack.c.l.b16 %v109
    %v619 = vunpack.c.l.b16 %v110
    %v620 = vunpack.c.l.b16 %v111
    %v621 = vunpack.c.l.b16 %v112
    %v622 = vunpack.c.l.b16 %v113
    %v623 = vunpack.c.l.b16 %v114
    %v624 = vunpack.c.l.b16 %v115
    %v625 = vunpack.c.l.b16 %v116
    %v626 = vunpack.c.l.b16 %v117
    %v627 = vpack.c.b16 %v612, %v611
    %v628 = vpack.c.b16 %v614, %v613
    %v629 = vpack.c.b16 %v616, %v615
    %v630 = vpack.c.b16 %v618, %v617
    %v631 = vpack.c.b16 %v620, %v619
    %v632 = vpack.c.b16 %v622, %v621
    %v633 = vpack.c.b16 %v624, %v623
    %v634 = vpack.c.b16 %v626, %v625
    %643 = vmatprep.subr.bf16.mxu0 0
    %644 = vmatpush1.bf16.msra.mxu0 %v627
    %645 = vmatprep.subr.bf16.mxu0 0
    %646 = vmatpush1.bf16.msra.mxu0 %v628
    %647 = vmatprep.subr.bf16.mxu0 0
    %648 = vmatpush1.bf16.msra.mxu0 %v629
    %649 = vmatprep.subr.bf16.mxu0 0
    %650 = vmatpush1.bf16.msra.mxu0 %v630
    %651 = vmatprep.subr.bf16.mxu0 0
    %652 = vmatpush1.bf16.msra.mxu0 %v631
    %653 = vmatprep.subr.bf16.mxu0 0
    %654 = vmatpush1.bf16.msra.mxu0 %v632
    %655 = vmatprep.subr.bf16.mxu0 0
    %656 = vmatpush1.bf16.msra.mxu0 %v633
    %657 = vmatprep.subr.bf16.mxu0 0
    %658 = vmatpush1.bf16.msra.mxu0 %v634
    %659 = vmatprep.subr.bf16.mxu0 0
    %660 = vmatpush1.bf16.msra.mxu0 0
    %661 = vmatprep.subr.bf16.mxu0 0
    %662 = vmatpush1.bf16.msra.mxu0 0
    %663 = vmatprep.subr.bf16.mxu0 0
    %664 = vmatpush1.bf16.msra.mxu0 0
    %665 = vmatprep.subr.bf16.mxu0 0
    %666 = vmatpush1.bf16.msra.mxu0 0
    %667 = vmatprep.subr.bf16.mxu0 0
    %668 = vmatpush1.bf16.msra.mxu0 0
    %669 = vmatprep.subr.bf16.mxu0 0
    %670 = vmatpush1.bf16.msra.mxu0 0
    %671 = vmatprep.subr.bf16.mxu0 0
    %672 = vmatpush1.bf16.msra.mxu0 0
    %673 = vmatprep.subr.bf16.mxu0 0
    %674 = vmatpush1.bf16.msra.mxu0 0
    %675 = vmatprep.mubr.bf16.mxu0 0
    %676 = vmatmul.mubr.bf16.gmra.mrb[0].mxu0 %v21
    %v677 = vpop.f32.mrb[0].mxu0
    %v678 = vadd.f32 0.0, %v677
    %v679 = vpop.f32.mrb[0].mxu0
    %v680 = vpop.f32.mrb[0].mxu0
    %v681 = vadd.f32 0.0, %v680
    %v682 = vpop.f32.mrb[0].mxu0
    %683 = vdwg.mxu0
    %v700 = vunpack.c.l.b16 %v118
    %v701 = vunpack.c.l.b16 %v119
    %v702 = vunpack.c.l.b16 %v120
    %v703 = vunpack.c.l.b16 %v121
    %v704 = vunpack.c.l.b16 %v122
    %v705 = vunpack.c.l.b16 %v123
    %v706 = vunpack.c.l.b16 %v124
    %v707 = vunpack.c.l.b16 %v125
    %v708 = vunpack.c.l.b16 %v126
    %v709 = vunpack.c.l.b16 %v127
    %v710 = vunpack.c.l.b16 %v128
    %v711 = vunpack.c.l.b16 %v129
    %v712 = vunpack.c.l.b16 %v130
    %v713 = vunpack.c.l.b16 %v131
    %v714 = vunpack.c.l.b16 %v132
    %v715 = vunpack.c.l.b16 %v133
    %v716 = vpack.c.b16 %v701, %v700
    %v717 = vpack.c.b16 %v703, %v702
    %v718 = vpack.c.b16 %v705, %v704
    %v719 = vpack.c.b16 %v707, %v706
    %v720 = vpack.c.b16 %v709, %v708
    %v721 = vpack.c.b16 %v711, %v710
    %v722 = vpack.c.b16 %v713, %v712
    %v723 = vpack.c.b16 %v715, %v714
    %732 = vmatprep.subr.bf16.mxu0 0
    %733 = vmatpush1.bf16.msra.mxu0 %v716
    %734 = vmatprep.subr.bf16.mxu0 0
    %735 = vmatpush1.bf16.msra.mxu0 %v717
    %736 = vmatprep.subr.bf16.mxu0 0
    %737 = vmatpush1.bf16.msra.mxu0 %v718
    %738 = vmatprep.subr.bf16.mxu0 0
    %739 = vmatpush1.bf16.msra.mxu0 %v719
    %740 = vmatprep.subr.bf16.mxu0 0
    %741 = vmatpush1.bf16.msra.mxu0 %v720
    %742 = vmatprep.subr.bf16.mxu0 0
    %743 = vmatpush1.bf16.msra.mxu0 %v721
    %744 = vmatprep.subr.bf16.mxu0 0
    %745 = vmatpush1.bf16.msra.mxu0 %v722
    %746 = vmatprep.subr.bf16.mxu0 0
    %747 = vmatpush1.bf16.msra.mxu0 %v723
    %748 = vmatprep.subr.bf16.mxu0 0
    %749 = vmatpush1.bf16.msra.mxu0 0
    %750 = vmatprep.subr.bf16.mxu0 0
    %751 = vmatpush1.bf16.msra.mxu0 0
    %752 = vmatprep.subr.bf16.mxu0 0
    %753 = vmatpush1.bf16.msra.mxu0 0
    %754 = vmatprep.subr.bf16.mxu0 0
    %755 = vmatpush1.bf16.msra.mxu0 0
    %756 = vmatprep.subr.bf16.mxu0 0
    %757 = vmatpush1.bf16.msra.mxu0 0
    %758 = vmatprep.subr.bf16.mxu0 0
    %759 = vmatpush1.bf16.msra.mxu0 0
    %760 = vmatprep.subr.bf16.mxu0 0
    %761 = vmatpush1.bf16.msra.mxu0 0
    %762 = vmatprep.subr.bf16.mxu0 0
    %763 = vmatpush1.bf16.msra.mxu0 0
    %764 = vmatprep.mubr.bf16.mxu0 0
    %765 = vmatmul.mubr.bf16.gmra.mrb[0].mxu0 %v21
    %v766 = vpop.f32.mrb[0].mxu0
    %v767 = vadd.f32 0.0, %v766
    %v768 = vpop.f32.mrb[0].mxu0
    %v769 = vpop.f32.mrb[0].mxu0
    %v770 = vadd.f32 0.0, %v769
    %v771 = vpop.f32.mrb[0].mxu0
    %772 = vdwg.mxu0
    %v789 = vunpack.c.l.b16 %v134
    %v790 = vunpack.c.l.b16 %v135
    %v791 = vunpack.c.l.b16 %v136
    %v792 = vunpack.c.l.b16 %v137
    %v793 = vunpack.c.l.b16 %v138
    %v794 = vunpack.c.l.b16 %v139
    %v795 = vunpack.c.l.b16 %v140
    %v796 = vunpack.c.l.b16 %v141
    %v797 = vunpack.c.l.b16 %v142
    %v798 = vunpack.c.l.b16 %v143
    %v799 = vunpack.c.l.b16 %v144
    %v800 = vunpack.c.l.b16 %v145
    %v801 = vunpack.c.l.b16 %v146
    %v802 = vunpack.c.l.b16 %v147
    %v803 = vunpack.c.l.b16 %v148
    %v804 = vunpack.c.l.b16 %v149
    %v805 = vpack.c.b16 %v790, %v789
    %v806 = vpack.c.b16 %v792, %v791
    %v807 = vpack.c.b16 %v794, %v793
    %v808 = vpack.c.b16 %v796, %v795
    %v809 = vpack.c.b16 %v798, %v797
    %v810 = vpack.c.b16 %v800, %v799
    %v811 = vpack.c.b16 %v802, %v801
    %v812 = vpack.c.b16 %v804, %v803
    %821 = vmatprep.subr.bf16.mxu0 0
    %822 = vmatpush1.bf16.msra.mxu0 %v805
    %823 = vmatprep.subr.bf16.mxu0 0
    %824 = vmatpush1.bf16.msra.mxu0 %v806
    %825 = vmatprep.subr.bf16.mxu0 0
    %826 = vmatpush1.bf16.msra.mxu0 %v807
    %827 = vmatprep.subr.bf16.mxu0 0
    %828 = vmatpush1.bf16.msra.mxu0 %v808
    %829 = vmatprep.subr.bf16.mxu0 0
    %830 = vmatpush1.bf16.msra.mxu0 %v809
    %831 = vmatprep.subr.bf16.mxu0 0
    %832 = vmatpush1.bf16.msra.mxu0 %v810
    %833 = vmatprep.subr.bf16.mxu0 0
    %834 = vmatpush1.bf16.msra.mxu0 %v811
    %835 = vmatprep.subr.bf16.mxu0 0
    %836 = vmatpush1.bf16.msra.mxu0 %v812
    %837 = vmatprep.subr.bf16.mxu0 0
    %838 = vmatpush1.bf16.msra.mxu0 0
    %839 = vmatprep.subr.bf16.mxu0 0
    %840 = vmatpush1.bf16.msra.mxu0 0
    %841 = vmatprep.subr.bf16.mxu0 0
    %842 = vmatpush1.bf16.msra.mxu0 0
    %843 = vmatprep.subr.bf16.mxu0 0
    %844 = vmatpush1.bf16.msra.mxu0 0
    %845 = vmatprep.subr.bf16.mxu0 0
    %846 = vmatpush1.bf16.msra.mxu0 0
    %847 = vmatprep.subr.bf16.mxu0 0
    %848 = vmatpush1.bf16.msra.mxu0 0
    %849 = vmatprep.subr.bf16.mxu0 0
    %850 = vmatpush1.bf16.msra.mxu0 0
    %851 = vmatprep.subr.bf16.mxu0 0
    %852 = vmatpush1.bf16.msra.mxu0 0
    %853 = vmatprep.mubr.bf16.mxu0 0
    %854 = vmatmul.mubr.bf16.gmra.mrb[0].mxu0 %v21
    %v855 = vpop.f32.mrb[0].mxu0
    %v856 = vadd.f32 0.0, %v855
    %v857 = vpop.f32.mrb[0].mxu0
    %v858 = vpop.f32.mrb[0].mxu0
    %v859 = vadd.f32 0.0, %v858
    %v860 = vpop.f32.mrb[0].mxu0
    %861 = vdwg.mxu0
    %v862 = vpack.c.bf16 %v236, %v233
    %v863 = vpack.c.bf16 %v325, %v322
    %v864 = vpack.c.bf16 %v414, %v411
    %v865 = vpack.c.bf16 %v503, %v500
    %v866 = vpack.c.bf16 %v592, %v589
    %v867 = vpack.c.bf16 %v681, %v678
    %v868 = vpack.c.bf16 %v770, %v767
    %v869 = vpack.c.bf16 %v859, %v856
    %871 = vrot.lane.b32.xlu0 %v862, 112
    %v872 = vpop.permute.xlu0 %871
    %vm873 = vcmask 130048
    %v875 = vsel %vm873, %v862, 0
    %v878 = vsel %vm873, %v872, 0
    %880 = vmatprep.subr.bf16.mxu0 0
    %881 = vmatpush1.bf16.xpose.msra.mxu0 %v878
    %882 = vmatprep.subr.bf16.mxu0 0
    %883 = vmatpush1.bf16.xpose.msra.mxu0 0
    %884 = vmatprep.subr.bf16.mxu0 0
    %885 = vmatpush1.bf16.xpose.msra.mxu0 0
    %886 = vmatprep.subr.bf16.mxu0 0
    %887 = vmatpush1.bf16.xpose.msra.mxu0 0
    %888 = vmatprep.subr.bf16.mxu0 0
    %889 = vmatpush1.bf16.xpose.msra.mxu0 0
    %890 = vmatprep.subr.bf16.mxu0 0
    %891 = vmatpush1.bf16.xpose.msra.mxu0 0
    %892 = vmatprep.subr.bf16.mxu0 0
    %893 = vmatpush1.bf16.xpose.msra.mxu0 0
    %894 = vmatprep.subr.bf16.mxu0 0
    %895 = vmatpush1.bf16.xpose.msra.mxu0 0
    %896 = vmatprep.subr.bf16.mxu0 0
    %897 = vmatpush1.bf16.xpose.msra.mxu0 0
    %898 = vmatprep.subr.bf16.mxu0 0
    %899 = vmatpush1.bf16.xpose.msra.mxu0 0
    %900 = vmatprep.subr.bf16.mxu0 0
    %901 = vmatpush1.bf16.xpose.msra.mxu0 0
    %902 = vmatprep.subr.bf16.mxu0 0
    %903 = vmatpush1.bf16.xpose.msra.mxu0 0
    %904 = vmatprep.subr.bf16.mxu0 0
    %905 = vmatpush1.bf16.xpose.msra.mxu0 0
    %906 = vmatprep.subr.bf16.mxu0 0
    %907 = vmatpush1.bf16.xpose.msra.mxu0 0
    %908 = vmatprep.subr.bf16.mxu0 0
    %909 = vmatpush1.bf16.xpose.msra.mxu0 0
    %910 = vmatprep.subr.bf16.mxu0 0
    %911 = vmatpush1.bf16.xpose.msra.mxu0 0
    %912 = vmatprep.mubr.bf16.mxu0 0
    %913 = vmatmul.mubr.bf16.gmra.mrb[0].mxu0 %v875
    %v914 = vpop.f32.mrb[0].mxu0
    %v915 = vadd.f32 0.0, %v914
    %v916 = vpop.f32.mrb[0].mxu0
    %v917 = vpop.f32.mrb[0].mxu0
    %v918 = vpop.f32.mrb[0].mxu0
    %919 = vdwg.mxu0
    %921 = vrot.lane.b32.xlu0 %v863, 112
    %v922 = vpop.permute.xlu0 %921
    %v924 = vsel %vm873, %v863, 0
    %v927 = vsel %vm873, %v922, 0
    %929 = vmatprep.subr.bf16.mxu0 0
    %930 = vmatpush1.bf16.xpose.msra.mxu0 %v927
    %931 = vmatprep.subr.bf16.mxu0 0
    %932 = vmatpush1.bf16.xpose.msra.mxu0 0
    %933 = vmatprep.subr.bf16.mxu0 0
    %934 = vmatpush1.bf16.xpose.msra.mxu0 0
    %935 = vmatprep.subr.bf16.mxu0 0
    %936 = vmatpush1.bf16.xpose.msra.mxu0 0
    %937 = vmatprep.subr.bf16.mxu0 0
    %938 = vmatpush1.bf16.xpose.msra.mxu0 0
    %939 = vmatprep.subr.bf16.mxu0 0
    %940 = vmatpush1.bf16.xpose.msra.mxu0 0
    %941 = vmatprep.subr.bf16.mxu0 0
    %942 = vmatpush1.bf16.xpose.msra.mxu0 0
    %943 = vmatprep.subr.bf16.mxu0 0
    %944 = vmatpush1.bf16.xpose.msra.mxu0 0
    %945 = vmatprep.subr.bf16.mxu0 0
    %946 = vmatpush1.bf16.xpose.msra.mxu0 0
    %947 = vmatprep.subr.bf16.mxu0 0
    %948 = vmatpush1.bf16.xpose.msra.mxu0 0
    %949 = vmatprep.subr.bf16.mxu0 0
    %950 = vmatpush1.bf16.xpose.msra.mxu0 0
    %951 = vmatprep.subr.bf16.mxu0 0
    %952 = vmatpush1.bf16.xpose.msra.mxu0 0
    %953 = vmatprep.subr.bf16.mxu0 0
    %954 = vmatpush1.bf16.xpose.msra.mxu0 0
    %955 = vmatprep.subr.bf16.mxu0 0
    %956 = vmatpush1.bf16.xpose.msra.mxu0 0
    %957 = vmatprep.subr.bf16.mxu0 0
    %958 = vmatpush1.bf16.xpose.msra.mxu0 0
    %959 = vmatprep.subr.bf16.mxu0 0
    %960 = vmatpush1.bf16.xpose.msra.mxu0 0
    %961 = vmatprep.mubr.bf16.mxu0 0
    %962 = vmatmul.mubr.bf16.gmra.mrb[0].mxu0 %v924
    %v963 = vpop.f32.mrb[0].mxu0
    %v964 = vadd.f32 0.0, %v963
    %v965 = vpop.f32.mrb[0].mxu0
    %v966 = vpop.f32.mrb[0].mxu0
    %v967 = vpop.f32.mrb[0].mxu0
    %968 = vdwg.mxu0
    %970 = vrot.lane.b32.xlu0 %v864, 112
    %v971 = vpop.permute.xlu0 %970
    %v973 = vsel %vm873, %v864, 0
    %v976 = vsel %vm873, %v971, 0
    %978 = vmatprep.subr.bf16.mxu0 0
    %979 = vmatpush1.bf16.xpose.msra.mxu0 %v976
    %980 = vmatprep.subr.bf16.mxu0 0
    %981 = vmatpush1.bf16.xpose.msra.mxu0 0
    %982 = vmatprep.subr.bf16.mxu0 0
    %983 = vmatpush1.bf16.xpose.msra.mxu0 0
    %984 = vmatprep.subr.bf16.mxu0 0
    %985 = vmatpush1.bf16.xpose.msra.mxu0 0
    %986 = vmatprep.subr.bf16.mxu0 0
    %987 = vmatpush1.bf16.xpose.msra.mxu0 0
    %988 = vmatprep.subr.bf16.mxu0 0
    %989 = vmatpush1.bf16.xpose.msra.mxu0 0
    %990 = vmatprep.subr.bf16.mxu0 0
    %991 = vmatpush1.bf16.xpose.msra.mxu0 0
    %992 = vmatprep.subr.bf16.mxu0 0
    %993 = vmatpush1.bf16.xpose.msra.mxu0 0
    %994 = vmatprep.subr.bf16.mxu0 0
    %995 = vmatpush1.bf16.xpose.msra.mxu0 0
    %996 = vmatprep.subr.bf16.mxu0 0
    %997 = vmatpush1.bf16.xpose.msra.mxu0 0
    %998 = vmatprep.subr.bf16.mxu0 0
    %999 = vmatpush1.bf16.xpose.msra.mxu0 0
    %1000 = vmatprep.subr.bf16.mxu0 0
    %1001 = vmatpush1.bf16.xpose.msra.mxu0 0
    %1002 = vmatprep.subr.bf16.mxu0 0
    %1003 = vmatpush1.bf16.xpose.msra.mxu0 0
    %1004 = vmatprep.subr.bf16.mxu0 0
    %1005 = vmatpush1.bf16.xpose.msra.mxu0 0
    %1006 = vmatprep.subr.bf16.mxu0 0
    %1007 = vmatpush1.bf16.xpose.msra.mxu0 0
    %1008 = vmatprep.subr.bf16.mxu0 0
    %1009 = vmatpush1.bf16.xpose.msra.mxu0 0
    %1010 = vmatprep.mubr.bf16.mxu0 0
    %1011 = vmatmul.mubr.bf16.gmra.mrb[0].mxu0 %v973
    %v1012 = vpop.f32.mrb[0].mxu0
    %v1013 = vadd.f32 0.0, %v1012
    %v1014 = vpop.f32.mrb[0].mxu0
    %v1015 = vpop.f32.mrb[0].mxu0
    %v1016 = vpop.f32.mrb[0].mxu0
    %1017 = vdwg.mxu0
    %1019 = vrot.lane.b32.xlu0 %v865, 112
    %v1020 = vpop.permute.xlu0 %1019
    %v1022 = vsel %vm873, %v865, 0
    %v1025 = vsel %vm873, %v1020, 0
    %1027 = vmatprep.subr.bf16.mxu0 0
    %1028 = vmatpush1.bf16.xpose.msra.mxu0 %v1025
    %1029 = vmatprep.subr.bf16.mxu0 0
    %1030 = vmatpush1.bf16.xpose.msra.mxu0 0
    %1031 = vmatprep.subr.bf16.mxu0 0
    %1032 = vmatpush1.bf16.xpose.msra.mxu0 0
    %1033 = vmatprep.subr.bf16.mxu0 0
    %1034 = vmatpush1.bf16.xpose.msra.mxu0 0
    %1035 = vmatprep.subr.bf16.mxu0 0
    %1036 = vmatpush1.bf16.xpose.msra.mxu0 0
    %1037 = vmatprep.subr.bf16.mxu0 0
    %1038 = vmatpush1.bf16.xpose.msra.mxu0 0
    %1039 = vmatprep.subr.bf16.mxu0 0
    %1040 = vmatpush1.bf16.xpose.msra.mxu0 0
    %1041 = vmatprep.subr.bf16.mxu0 0
    %1042 = vmatpush1.bf16.xpose.msra.mxu0 0
    %1043 = vmatprep.subr.bf16.mxu0 0
    %1044 = vmatpush1.bf16.xpose.msra.mxu0 0
    %1045 = vmatprep.subr.bf16.mxu0 0
    %1046 = vmatpush1.bf16.xpose.msra.mxu0 0
    %1047 = vmatprep.subr.bf16.mxu0 0
    %1048 = vmatpush1.bf16.xpose.msra.mxu0 0
    %1049 = vmatprep.subr.bf16.mxu0 0
    %1050 = vmatpush1.bf16.xpose.msra.mxu0 0
    %1051 = vmatprep.subr.bf16.mxu0 0
    %1052 = vmatpush1.bf16.xpose.msra.mxu0 0
    %1053 = vmatprep.subr.bf16.mxu0 0
    %1054 = vmatpush1.bf16.xpose.msra.mxu0 0
    %1055 = vmatprep.subr.bf16.mxu0 0
    %1056 = vmatpush1.bf16.xpose.msra.mxu0 0
    %1057 = vmatprep.subr.bf16.mxu0 0
    %1058 = vmatpush1.bf16.xpose.msra.mxu0 0
    %1059 = vmatprep.mubr.bf16.mxu0 0
    %1060 = vmatmul.mubr.bf16.gmra.mrb[0].mxu0 %v1022
    %v1061 = vpop.f32.mrb[0].mxu0
    %v1062 = vadd.f32 0.0, %v1061
    %v1063 = vpop.f32.mrb[0].mxu0
    %v1064 = vpop.f32.mrb[0].mxu0
    %v1065 = vpop.f32.mrb[0].mxu0
    %1066 = vdwg.mxu0
    %1068 = vrot.lane.b32.xlu0 %v866, 112
    %v1069 = vpop.permute.xlu0 %1068
    %v1071 = vsel %vm873, %v866, 0
    %v1074 = vsel %vm873, %v1069, 0
    %1076 = vmatprep.subr.bf16.mxu0 0
    %1077 = vmatpush1.bf16.xpose.msra.mxu0 %v1074
    %1078 = vmatprep.subr.bf16.mxu0 0
    %1079 = vmatpush1.bf16.xpose.msra.mxu0 0
    %1080 = vmatprep.subr.bf16.mxu0 0
    %1081 = vmatpush1.bf16.xpose.msra.mxu0 0
    %1082 = vmatprep.subr.bf16.mxu0 0
    %1083 = vmatpush1.bf16.xpose.msra.mxu0 0
    %1084 = vmatprep.subr.bf16.mxu0 0
    %1085 = vmatpush1.bf16.xpose.msra.mxu0 0
    %1086 = vmatprep.subr.bf16.mxu0 0
    %1087 = vmatpush1.bf16.xpose.msra.mxu0 0
    %1088 = vmatprep.subr.bf16.mxu0 0
    %1089 = vmatpush1.bf16.xpose.msra.mxu0 0
    %1090 = vmatprep.subr.bf16.mxu0 0
    %1091 = vmatpush1.bf16.xpose.msra.mxu0 0
    %1092 = vmatprep.subr.bf16.mxu0 0
    %1093 = vmatpush1.bf16.xpose.msra.mxu0 0
    %1094 = vmatprep.subr.bf16.mxu0 0
    %1095 = vmatpush1.bf16.xpose.msra.mxu0 0
    %1096 = vmatprep.subr.bf16.mxu0 0
    %1097 = vmatpush1.bf16.xpose.msra.mxu0 0
    %1098 = vmatprep.subr.bf16.mxu0 0
    %1099 = vmatpush1.bf16.xpose.msra.mxu0 0
    %1100 = vmatprep.subr.bf16.mxu0 0
    %1101 = vmatpush1.bf16.xpose.msra.mxu0 0
    %1102 = vmatprep.subr.bf16.mxu0 0
    %1103 = vmatpush1.bf16.xpose.msra.mxu0 0
    %1104 = vmatprep.subr.bf16.mxu0 0
    %1105 = vmatpush1.bf16.xpose.msra.mxu0 0
    %1106 = vmatprep.subr.bf16.mxu0 0
    %1107 = vmatpush1.bf16.xpose.msra.mxu0 0
    %1108 = vmatprep.mubr.bf16.mxu0 0
    %1109 = vmatmul.mubr.bf16.gmra.mrb[0].mxu0 %v1071
    %v1110 = vpop.f32.mrb[0].mxu0
    %v1111 = vadd.f32 0.0, %v1110
    %v1112 = vpop.f32.mrb[0].mxu0
    %v1113 = vpop.f32.mrb[0].mxu0
    %v1114 = vpop.f32.mrb[0].mxu0
    %1115 = vdwg.mxu0
    %1117 = vrot.lane.b32.xlu0 %v867, 112
    %v1118 = vpop.permute.xlu0 %1117
    %v1120 = vsel %vm873, %v867, 0
    %v1123 = vsel %vm873, %v1118, 0
    %1125 = vmatprep.subr.bf16.mxu0 0
    %1126 = vmatpush1.bf16.xpose.msra.mxu0 %v1123
    %1127 = vmatprep.subr.bf16.mxu0 0
    %1128 = vmatpush1.bf16.xpose.msra.mxu0 0
    %1129 = vmatprep.subr.bf16.mxu0 0
    %1130 = vmatpush1.bf16.xpose.msra.mxu0 0
    %1131 = vmatprep.subr.bf16.mxu0 0
    %1132 = vmatpush1.bf16.xpose.msra.mxu0 0
    %1133 = vmatprep.subr.bf16.mxu0 0
    %1134 = vmatpush1.bf16.xpose.msra.mxu0 0
    %1135 = vmatprep.subr.bf16.mxu0 0
    %1136 = vmatpush1.bf16.xpose.msra.mxu0 0
    %1137 = vmatprep.subr.bf16.mxu0 0
    %1138 = vmatpush1.bf16.xpose.msra.mxu0 0
    %1139 = vmatprep.subr.bf16.mxu0 0
    %1140 = vmatpush1.bf16.xpose.msra.mxu0 0
    %1141 = vmatprep.subr.bf16.mxu0 0
    %1142 = vmatpush1.bf16.xpose.msra.mxu0 0
    %1143 = vmatprep.subr.bf16.mxu0 0
    %1144 = vmatpush1.bf16.xpose.msra.mxu0 0
    %1145 = vmatprep.subr.bf16.mxu0 0
    %1146 = vmatpush1.bf16.xpose.msra.mxu0 0
    %1147 = vmatprep.subr.bf16.mxu0 0
    %1148 = vmatpush1.bf16.xpose.msra.mxu0 0
    %1149 = vmatprep.subr.bf16.mxu0 0
    %1150 = vmatpush1.bf16.xpose.msra.mxu0 0
    %1151 = vmatprep.subr.bf16.mxu0 0
    %1152 = vmatpush1.bf16.xpose.msra.mxu0 0
    %1153 = vmatprep.subr.bf16.mxu0 0
    %1154 = vmatpush1.bf16.xpose.msra.mxu0 0
    %1155 = vmatprep.subr.bf16.mxu0 0
    %1156 = vmatpush1.bf16.xpose.msra.mxu0 0
    %1157 = vmatprep.mubr.bf16.mxu0 0
    %1158 = vmatmul.mubr.bf16.gmra.mrb[0].mxu0 %v1120
    %v1159 = vpop.f32.mrb[0].mxu0
    %v1160 = vadd.f32 0.0, %v1159
    %v1161 = vpop.f32.mrb[0].mxu0
    %v1162 = vpop.f32.mrb[0].mxu0
    %v1163 = vpop.f32.mrb[0].mxu0
    %1164 = vdwg.mxu0
    %1166 = vrot.lane.b32.xlu0 %v868, 112
    %v1167 = vpop.permute.xlu0 %1166
    %v1169 = vsel %vm873, %v868, 0
    %v1172 = vsel %vm873, %v1167, 0
    %1174 = vmatprep.subr.bf16.mxu0 0
    %1175 = vmatpush1.bf16.xpose.msra.mxu0 %v1172
    %1176 = vmatprep.subr.bf16.mxu0 0
    %1177 = vmatpush1.bf16.xpose.msra.mxu0 0
    %1178 = vmatprep.subr.bf16.mxu0 0
    %1179 = vmatpush1.bf16.xpose.msra.mxu0 0
    %1180 = vmatprep.subr.bf16.mxu0 0
    %1181 = vmatpush1.bf16.xpose.msra.mxu0 0
    %1182 = vmatprep.subr.bf16.mxu0 0
    %1183 = vmatpush1.bf16.xpose.msra.mxu0 0
    %1184 = vmatprep.subr.bf16.mxu0 0
    %1185 = vmatpush1.bf16.xpose.msra.mxu0 0
    %1186 = vmatprep.subr.bf16.mxu0 0
    %1187 = vmatpush1.bf16.xpose.msra.mxu0 0
    %1188 = vmatprep.subr.bf16.mxu0 0
    %1189 = vmatpush1.bf16.xpose.msra.mxu0 0
    %1190 = vmatprep.subr.bf16.mxu0 0
    %1191 = vmatpush1.bf16.xpose.msra.mxu0 0
    %1192 = vmatprep.subr.bf16.mxu0 0
    %1193 = vmatpush1.bf16.xpose.msra.mxu0 0
    %1194 = vmatprep.subr.bf16.mxu0 0
    %1195 = vmatpush1.bf16.xpose.msra.mxu0 0
    %1196 = vmatprep.subr.bf16.mxu0 0
    %1197 = vmatpush1.bf16.xpose.msra.mxu0 0
    %1198 = vmatprep.subr.bf16.mxu0 0
    %1199 = vmatpush1.bf16.xpose.msra.mxu0 0
    %1200 = vmatprep.subr.bf16.mxu0 0
    %1201 = vmatpush1.bf16.xpose.msra.mxu0 0
    %1202 = vmatprep.subr.bf16.mxu0 0
    %1203 = vmatpush1.bf16.xpose.msra.mxu0 0
    %1204 = vmatprep.subr.bf16.mxu0 0
    %1205 = vmatpush1.bf16.xpose.msra.mxu0 0
    %1206 = vmatprep.mubr.bf16.mxu0 0
    %1207 = vmatmul.mubr.bf16.gmra.mrb[0].mxu0 %v1169
    %v1208 = vpop.f32.mrb[0].mxu0
    %v1209 = vadd.f32 0.0, %v1208
    %v1210 = vpop.f32.mrb[0].mxu0
    %v1211 = vpop.f32.mrb[0].mxu0
    %v1212 = vpop.f32.mrb[0].mxu0
    %1213 = vdwg.mxu0
    %1215 = vrot.lane.b32.xlu0 %v869, 112
    %v1216 = vpop.permute.xlu0 %1215
    %v1218 = vsel %vm873, %v869, 0
    %v1221 = vsel %vm873, %v1216, 0
    %1223 = vmatprep.subr.bf16.mxu0 0
    %1224 = vmatpush1.bf16.xpose.msra.mxu0 %v1221
    %1225 = vmatprep.subr.bf16.mxu0 0
    %1226 = vmatpush1.bf16.xpose.msra.mxu0 0
    %1227 = vmatprep.subr.bf16.mxu0 0
    %1228 = vmatpush1.bf16.xpose.msra.mxu0 0
    %1229 = vmatprep.subr.bf16.mxu0 0
    %1230 = vmatpush1.bf16.xpose.msra.mxu0 0
    %1231 = vmatprep.subr.bf16.mxu0 0
    %1232 = vmatpush1.bf16.xpose.msra.mxu0 0
    %1233 = vmatprep.subr.bf16.mxu0 0
    %1234 = vmatpush1.bf16.xpose.msra.mxu0 0
    %1235 = vmatprep.subr.bf16.mxu0 0
    %1236 = vmatpush1.bf16.xpose.msra.mxu0 0
    %1237 = vmatprep.subr.bf16.mxu0 0
    %1238 = vmatpush1.bf16.xpose.msra.mxu0 0
    %1239 = vmatprep.subr.bf16.mxu0 0
    %1240 = vmatpush1.bf16.xpose.msra.mxu0 0
    %1241 = vmatprep.subr.bf16.mxu0 0
    %1242 = vmatpush1.bf16.xpose.msra.mxu0 0
    %1243 = vmatprep.subr.bf16.mxu0 0
    %1244 = vmatpush1.bf16.xpose.msra.mxu0 0
    %1245 = vmatprep.subr.bf16.mxu0 0
    %1246 = vmatpush1.bf16.xpose.msra.mxu0 0
    %1247 = vmatprep.subr.bf16.mxu0 0
    %1248 = vmatpush1.bf16.xpose.msra.mxu0 0
    %1249 = vmatprep.subr.bf16.mxu0 0
    %1250 = vmatpush1.bf16.xpose.msra.mxu0 0
    %1251 = vmatprep.subr.bf16.mxu0 0
    %1252 = vmatpush1.bf16.xpose.msra.mxu0 0
    %1253 = vmatprep.subr.bf16.mxu0 0
    %1254 = vmatpush1.bf16.xpose.msra.mxu0 0
    %1255 = vmatprep.mubr.bf16.mxu0 0
    %1256 = vmatmul.mubr.bf16.gmra.mrb[0].mxu0 %v1218
    %v1257 = vpop.f32.mrb[0].mxu0
    %v1258 = vadd.f32 0.0, %v1257
    %v1259 = vpop.f32.mrb[0].mxu0
    %v1260 = vpop.f32.mrb[0].mxu0
    %v1261 = vpop.f32.mrb[0].mxu0
    %1262 = vdwg.mxu0
    %vm1263 = vcmask 64512
    %v1264 = vsel %vm1263, %v915, -inf
    %1265 = vmax.xlane.f32.xlu0 %v1264
    %v1266 = vpop.xlane.xlu0 %1265
    %v1267 = vsel %vm1263, %v964, -inf
    %1268 = vmax.xlane.f32.xlu0 %v1267
    %v1269 = vpop.xlane.xlu0 %1268
    %v1270 = vsel %vm1263, %v1013, -inf
    %1271 = vmax.xlane.f32.xlu0 %v1270
    %v1272 = vpop.xlane.xlu0 %1271
    %v1273 = vsel %vm1263, %v1062, -inf
    %1274 = vmax.xlane.f32.xlu0 %v1273
    %v1275 = vpop.xlane.xlu0 %1274
    %v1276 = vsel %vm1263, %v1111, -inf
    %1277 = vmax.xlane.f32.xlu0 %v1276
    %v1278 = vpop.xlane.xlu0 %1277
    %v1279 = vsel %vm1263, %v1160, -inf
    %1280 = vmax.xlane.f32.xlu0 %v1279
    %v1281 = vpop.xlane.xlu0 %1280
    %v1282 = vsel %vm1263, %v1209, -inf
    %1283 = vmax.xlane.f32.xlu0 %v1282
    %v1284 = vpop.xlane.xlu0 %1283
    %v1285 = vsel %vm1263, %v1258, -inf
    %1286 = vmax.xlane.f32.xlu0 %v1285
    %v1287 = vpop.xlane.xlu0 %1286
    %v1288 = vsub.f32 %v915, %v1266
    %v1289 = vsub.f32 %v964, %v1269
    %v1290 = vsub.f32 %v1013, %v1272
    %v1291 = vsub.f32 %v1062, %v1275
    %v1292 = vsub.f32 %v1111, %v1278
    %v1293 = vsub.f32 %v1160, %v1281
    %v1294 = vsub.f32 %v1209, %v1284
    %v1295 = vsub.f32 %v1258, %v1287
    %v1296 = vmul.f32 %v1288, 1.442695
    %v1297 = vpow.pop %v1296
    %v1298 = vmul.f32 %v1289, 1.442695
    %v1299 = vpow.pop %v1298
    %v1300 = vmul.f32 %v1290, 1.442695
    %v1301 = vpow.pop %v1300
    %v1302 = vmul.f32 %v1291, 1.442695
    %v1303 = vpow.pop %v1302
    %v1304 = vmul.f32 %v1292, 1.442695
    %v1305 = vpow.pop %v1304
    %v1306 = vmul.f32 %v1293, 1.442695
    %v1307 = vpow.pop %v1306
    %v1308 = vmul.f32 %v1294, 1.442695
    %v1309 = vpow.pop %v1308
    %v1310 = vmul.f32 %v1295, 1.442695
    %v1311 = vpow.pop %v1310
    %v1312 = vsel %vm1263, %v1297, 0.0
    %1313 = vadd.xlane.f32.xlu0 %v1312
    %v1314 = vpop.xlane.xlu0 %1313
    %v1315 = vsel %vm1263, %v1299, 0.0
    %1316 = vadd.xlane.f32.xlu0 %v1315
    %v1317 = vpop.xlane.xlu0 %1316
    %v1318 = vsel %vm1263, %v1301, 0.0
    %1319 = vadd.xlane.f32.xlu0 %v1318
    %v1320 = vpop.xlane.xlu0 %1319
    %v1321 = vsel %vm1263, %v1303, 0.0
    %1322 = vadd.xlane.f32.xlu0 %v1321
    %v1323 = vpop.xlane.xlu0 %1322
    %v1324 = vsel %vm1263, %v1305, 0.0
    %1325 = vadd.xlane.f32.xlu0 %v1324
    %v1326 = vpop.xlane.xlu0 %1325
    %v1327 = vsel %vm1263, %v1307, 0.0
    %1328 = vadd.xlane.f32.xlu0 %v1327
    %v1329 = vpop.xlane.xlu0 %1328
    %v1330 = vsel %vm1263, %v1309, 0.0
    %1331 = vadd.xlane.f32.xlu0 %v1330
    %v1332 = vpop.xlane.xlu0 %1331
    %v1333 = vsel %vm1263, %v1311, 0.0
    %1334 = vadd.xlane.f32.xlu0 %v1333
    %v1335 = vpop.xlane.xlu0 %1334
    %v1336 = vrcp.pop %v1314
    %v1337 = vrcp.pop %v1317
    %v1338 = vrcp.pop %v1320
    %v1339 = vrcp.pop %v1323
    %v1340 = vrcp.pop %v1326
    %v1341 = vrcp.pop %v1329
    %v1342 = vrcp.pop %v1332
    %v1343 = vrcp.pop %v1335
    %v1344 = vmul.f32 %v1297, %v1336
    %v1345 = vmul.f32 %v1299, %v1337
    %v1346 = vmul.f32 %v1301, %v1338
    %v1347 = vmul.f32 %v1303, %v1339
    %v1348 = vmul.f32 %v1305, %v1340
    %v1349 = vmul.f32 %v1307, %v1341
    %v1350 = vmul.f32 %v1309, %v1342
    %v1351 = vmul.f32 %v1311, %v1343
    %v1352 = vpack.c.bf16 %v1344, %v1344
    %v1353 = vpack.c.bf16 %v1345, %v1345
    %v1354 = vpack.c.bf16 %v1346, %v1346
    %v1355 = vpack.c.bf16 %v1347, %v1347
    %v1356 = vpack.c.bf16 %v1348, %v1348
    %v1357 = vpack.c.bf16 %v1349, %v1349
    %v1358 = vpack.c.bf16 %v1350, %v1350
    %v1359 = vpack.c.bf16 %v1351, %v1351
    %1360 = vrot.lane.b32.xlu0 %v862, 96
    %v1361 = vpop.permute.xlu0 %1360
    %v1363 = vsel %vm1263, %v1352, 0
    %vm1365 = vcmask 1043456
    %v1367 = vsel %vm1365, %v1361, 0
    %1369 = vmatprep.subr.bf16.mxu0 0
    %1370 = vmatpush1.bf16.msra.mxu0 %v1367
    %1371 = vmatprep.subr.bf16.mxu0 0
    %1372 = vmatpush1.bf16.msra.mxu0 0
    %1373 = vmatprep.subr.bf16.mxu0 0
    %1374 = vmatpush1.bf16.msra.mxu0 0
    %1375 = vmatprep.subr.bf16.mxu0 0
    %1376 = vmatpush1.bf16.msra.mxu0 0
    %1377 = vmatprep.subr.bf16.mxu0 0
    %1378 = vmatpush1.bf16.msra.mxu0 0
    %1379 = vmatprep.subr.bf16.mxu0 0
    %1380 = vmatpush1.bf16.msra.mxu0 0
    %1381 = vmatprep.subr.bf16.mxu0 0
    %1382 = vmatpush1.bf16.msra.mxu0 0
    %1383 = vmatprep.subr.bf16.mxu0 0
    %1384 = vmatpush1.bf16.msra.mxu0 0
    %1385 = vmatprep.subr.bf16.mxu0 0
    %1386 = vmatpush1.bf16.msra.mxu0 0
    %1387 = vmatprep.subr.bf16.mxu0 0
    %1388 = vmatpush1.bf16.msra.mxu0 0
    %1389 = vmatprep.subr.bf16.mxu0 0
    %1390 = vmatpush1.bf16.msra.mxu0 0
    %1391 = vmatprep.subr.bf16.mxu0 0
    %1392 = vmatpush1.bf16.msra.mxu0 0
    %1393 = vmatprep.subr.bf16.mxu0 0
    %1394 = vmatpush1.bf16.msra.mxu0 0
    %1395 = vmatprep.subr.bf16.mxu0 0
    %1396 = vmatpush1.bf16.msra.mxu0 0
    %1397 = vmatprep.subr.bf16.mxu0 0
    %1398 = vmatpush1.bf16.msra.mxu0 0
    %1399 = vmatprep.subr.bf16.mxu0 0
    %1400 = vmatpush1.bf16.msra.mxu0 0
    %1401 = vmatprep.mubr.bf16.mxu0 0
    %1402 = vmatmul.mubr.bf16.gmra.mrb[0].mxu0 %v1363
    %v1403 = vpop.f32.mrb[0].mxu0
    %v1404 = vadd.f32 0.0, %v1403
    %v1405 = vpop.f32.mrb[0].mxu0
    %v1406 = vpop.f32.mrb[0].mxu0
    %v1407 = vpop.f32.mrb[0].mxu0
    %1408 = vdwg.mxu0
    %1409 = vrot.lane.b32.xlu0 %v863, 96
    %v1410 = vpop.permute.xlu0 %1409
    %v1412 = vsel %vm1263, %v1353, 0
    %v1415 = vsel %vm1365, %v1410, 0
    %1417 = vmatprep.subr.bf16.mxu0 0
    %1418 = vmatpush1.bf16.msra.mxu0 %v1415
    %1419 = vmatprep.subr.bf16.mxu0 0
    %1420 = vmatpush1.bf16.msra.mxu0 0
    %1421 = vmatprep.subr.bf16.mxu0 0
    %1422 = vmatpush1.bf16.msra.mxu0 0
    %1423 = vmatprep.subr.bf16.mxu0 0
    %1424 = vmatpush1.bf16.msra.mxu0 0
    %1425 = vmatprep.subr.bf16.mxu0 0
    %1426 = vmatpush1.bf16.msra.mxu0 0
    %1427 = vmatprep.subr.bf16.mxu0 0
    %1428 = vmatpush1.bf16.msra.mxu0 0
    %1429 = vmatprep.subr.bf16.mxu0 0
    %1430 = vmatpush1.bf16.msra.mxu0 0
    %1431 = vmatprep.subr.bf16.mxu0 0
    %1432 = vmatpush1.bf16.msra.mxu0 0
    %1433 = vmatprep.subr.bf16.mxu0 0
    %1434 = vmatpush1.bf16.msra.mxu0 0
    %1435 = vmatprep.subr.bf16.mxu0 0
    %1436 = vmatpush1.bf16.msra.mxu0 0
    %1437 = vmatprep.subr.bf16.mxu0 0
    %1438 = vmatpush1.bf16.msra.mxu0 0
    %1439 = vmatprep.subr.bf16.mxu0 0
    %1440 = vmatpush1.bf16.msra.mxu0 0
    %1441 = vmatprep.subr.bf16.mxu0 0
    %1442 = vmatpush1.bf16.msra.mxu0 0
    %1443 = vmatprep.subr.bf16.mxu0 0
    %1444 = vmatpush1.bf16.msra.mxu0 0
    %1445 = vmatprep.subr.bf16.mxu0 0
    %1446 = vmatpush1.bf16.msra.mxu0 0
    %1447 = vmatprep.subr.bf16.mxu0 0
    %1448 = vmatpush1.bf16.msra.mxu0 0
    %1449 = vmatprep.mubr.bf16.mxu0 0
    %1450 = vmatmul.mubr.bf16.gmra.mrb[0].mxu0 %v1412
    %v1451 = vpop.f32.mrb[0].mxu0
    %v1452 = vadd.f32 0.0, %v1451
    %v1453 = vpop.f32.mrb[0].mxu0
    %v1454 = vpop.f32.mrb[0].mxu0
    %v1455 = vpop.f32.mrb[0].mxu0
    %1456 = vdwg.mxu0
    %1457 = vrot.lane.b32.xlu0 %v864, 96
    %v1458 = vpop.permute.xlu0 %1457
    %v1460 = vsel %vm1263, %v1354, 0
    %v1463 = vsel %vm1365, %v1458, 0
    %1465 = vmatprep.subr.bf16.mxu0 0
    %1466 = vmatpush1.bf16.msra.mxu0 %v1463
    %1467 = vmatprep.subr.bf16.mxu0 0
    %1468 = vmatpush1.bf16.msra.mxu0 0
    %1469 = vmatprep.subr.bf16.mxu0 0
    %1470 = vmatpush1.bf16.msra.mxu0 0
    %1471 = vmatprep.subr.bf16.mxu0 0
    %1472 = vmatpush1.bf16.msra.mxu0 0
    %1473 = vmatprep.subr.bf16.mxu0 0
    %1474 = vmatpush1.bf16.msra.mxu0 0
    %1475 = vmatprep.subr.bf16.mxu0 0
    %1476 = vmatpush1.bf16.msra.mxu0 0
    %1477 = vmatprep.subr.bf16.mxu0 0
    %1478 = vmatpush1.bf16.msra.mxu0 0
    %1479 = vmatprep.subr.bf16.mxu0 0
    %1480 = vmatpush1.bf16.msra.mxu0 0
    %1481 = vmatprep.subr.bf16.mxu0 0
    %1482 = vmatpush1.bf16.msra.mxu0 0
    %1483 = vmatprep.subr.bf16.mxu0 0
    %1484 = vmatpush1.bf16.msra.mxu0 0
    %1485 = vmatprep.subr.bf16.mxu0 0
    %1486 = vmatpush1.bf16.msra.mxu0 0
    %1487 = vmatprep.subr.bf16.mxu0 0
    %1488 = vmatpush1.bf16.msra.mxu0 0
    %1489 = vmatprep.subr.bf16.mxu0 0
    %1490 = vmatpush1.bf16.msra.mxu0 0
    %1491 = vmatprep.subr.bf16.mxu0 0
    %1492 = vmatpush1.bf16.msra.mxu0 0
    %1493 = vmatprep.subr.bf16.mxu0 0
    %1494 = vmatpush1.bf16.msra.mxu0 0
    %1495 = vmatprep.subr.bf16.mxu0 0
    %1496 = vmatpush1.bf16.msra.mxu0 0
    %1497 = vmatprep.mubr.bf16.mxu0 0
    %1498 = vmatmul.mubr.bf16.gmra.mrb[0].mxu0 %v1460
    %v1499 = vpop.f32.mrb[0].mxu0
    %v1500 = vadd.f32 0.0, %v1499
    %v1501 = vpop.f32.mrb[0].mxu0
    %v1502 = vpop.f32.mrb[0].mxu0
    %v1503 = vpop.f32.mrb[0].mxu0
    %1504 = vdwg.mxu0
    %1505 = vrot.lane.b32.xlu0 %v865, 96
    %v1506 = vpop.permute.xlu0 %1505
    %v1508 = vsel %vm1263, %v1355, 0
    %v1511 = vsel %vm1365, %v1506, 0
    %1513 = vmatprep.subr.bf16.mxu0 0
    %1514 = vmatpush1.bf16.msra.mxu0 %v1511
    %1515 = vmatprep.subr.bf16.mxu0 0
    %1516 = vmatpush1.bf16.msra.mxu0 0
    %1517 = vmatprep.subr.bf16.mxu0 0
    %1518 = vmatpush1.bf16.msra.mxu0 0
    %1519 = vmatprep.subr.bf16.mxu0 0
    %1520 = vmatpush1.bf16.msra.mxu0 0
    %1521 = vmatprep.subr.bf16.mxu0 0
    %1522 = vmatpush1.bf16.msra.mxu0 0
    %1523 = vmatprep.subr.bf16.mxu0 0
    %1524 = vmatpush1.bf16.msra.mxu0 0
    %1525 = vmatprep.subr.bf16.mxu0 0
    %1526 = vmatpush1.bf16.msra.mxu0 0
    %1527 = vmatprep.subr.bf16.mxu0 0
    %1528 = vmatpush1.bf16.msra.mxu0 0
    %1529 = vmatprep.subr.bf16.mxu0 0
    %1530 = vmatpush1.bf16.msra.mxu0 0
    %1531 = vmatprep.subr.bf16.mxu0 0
    %1532 = vmatpush1.bf16.msra.mxu0 0
    %1533 = vmatprep.subr.bf16.mxu0 0
    %1534 = vmatpush1.bf16.msra.mxu0 0
    %1535 = vmatprep.subr.bf16.mxu0 0
    %1536 = vmatpush1.bf16.msra.mxu0 0
    %1537 = vmatprep.subr.bf16.mxu0 0
    %1538 = vmatpush1.bf16.msra.mxu0 0
    %1539 = vmatprep.subr.bf16.mxu0 0
    %1540 = vmatpush1.bf16.msra.mxu0 0
    %1541 = vmatprep.subr.bf16.mxu0 0
    %1542 = vmatpush1.bf16.msra.mxu0 0
    %1543 = vmatprep.subr.bf16.mxu0 0
    %1544 = vmatpush1.bf16.msra.mxu0 0
    %1545 = vmatprep.mubr.bf16.mxu0 0
    %1546 = vmatmul.mubr.bf16.gmra.mrb[0].mxu0 %v1508
    %v1547 = vpop.f32.mrb[0].mxu0
    %v1548 = vadd.f32 0.0, %v1547
    %v1549 = vpop.f32.mrb[0].mxu0
    %v1550 = vpop.f32.mrb[0].mxu0
    %v1551 = vpop.f32.mrb[0].mxu0
    %1552 = vdwg.mxu0
    %1553 = vrot.lane.b32.xlu0 %v866, 96
    %v1554 = vpop.permute.xlu0 %1553
    %v1556 = vsel %vm1263, %v1356, 0
    %v1559 = vsel %vm1365, %v1554, 0
    %1561 = vmatprep.subr.bf16.mxu0 0
    %1562 = vmatpush1.bf16.msra.mxu0 %v1559
    %1563 = vmatprep.subr.bf16.mxu0 0
    %1564 = vmatpush1.bf16.msra.mxu0 0
    %1565 = vmatprep.subr.bf16.mxu0 0
    %1566 = vmatpush1.bf16.msra.mxu0 0
    %1567 = vmatprep.subr.bf16.mxu0 0
    %1568 = vmatpush1.bf16.msra.mxu0 0
    %1569 = vmatprep.subr.bf16.mxu0 0
    %1570 = vmatpush1.bf16.msra.mxu0 0
    %1571 = vmatprep.subr.bf16.mxu0 0
    %1572 = vmatpush1.bf16.msra.mxu0 0
    %1573 = vmatprep.subr.bf16.mxu0 0
    %1574 = vmatpush1.bf16.msra.mxu0 0
    %1575 = vmatprep.subr.bf16.mxu0 0
    %1576 = vmatpush1.bf16.msra.mxu0 0
    %1577 = vmatprep.subr.bf16.mxu0 0
    %1578 = vmatpush1.bf16.msra.mxu0 0
    %1579 = vmatprep.subr.bf16.mxu0 0
    %1580 = vmatpush1.bf16.msra.mxu0 0
    %1581 = vmatprep.subr.bf16.mxu0 0
    %1582 = vmatpush1.bf16.msra.mxu0 0
    %1583 = vmatprep.subr.bf16.mxu0 0
    %1584 = vmatpush1.bf16.msra.mxu0 0
    %1585 = vmatprep.subr.bf16.mxu0 0
    %1586 = vmatpush1.bf16.msra.mxu0 0
    %1587 = vmatprep.subr.bf16.mxu0 0
    %1588 = vmatpush1.bf16.msra.mxu0 0
    %1589 = vmatprep.subr.bf16.mxu0 0
    %1590 = vmatpush1.bf16.msra.mxu0 0
    %1591 = vmatprep.subr.bf16.mxu0 0
    %1592 = vmatpush1.bf16.msra.mxu0 0
    %1593 = vmatprep.mubr.bf16.mxu0 0
    %1594 = vmatmul.mubr.bf16.gmra.mrb[0].mxu0 %v1556
    %v1595 = vpop.f32.mrb[0].mxu0
    %v1596 = vadd.f32 0.0, %v1595
    %v1597 = vpop.f32.mrb[0].mxu0
    %v1598 = vpop.f32.mrb[0].mxu0
    %v1599 = vpop.f32.mrb[0].mxu0
    %1600 = vdwg.mxu0
    %1601 = vrot.lane.b32.xlu0 %v867, 96
    %v1602 = vpop.permute.xlu0 %1601
    %v1604 = vsel %vm1263, %v1357, 0
    %v1607 = vsel %vm1365, %v1602, 0
    %1609 = vmatprep.subr.bf16.mxu0 0
    %1610 = vmatpush1.bf16.msra.mxu0 %v1607
    %1611 = vmatprep.subr.bf16.mxu0 0
    %1612 = vmatpush1.bf16.msra.mxu0 0
    %1613 = vmatprep.subr.bf16.mxu0 0
    %1614 = vmatpush1.bf16.msra.mxu0 0
    %1615 = vmatprep.subr.bf16.mxu0 0
    %1616 = vmatpush1.bf16.msra.mxu0 0
    %1617 = vmatprep.subr.bf16.mxu0 0
    %1618 = vmatpush1.bf16.msra.mxu0 0
    %1619 = vmatprep.subr.bf16.mxu0 0
    %1620 = vmatpush1.bf16.msra.mxu0 0
    %1621 = vmatprep.subr.bf16.mxu0 0
    %1622 = vmatpush1.bf16.msra.mxu0 0
    %1623 = vmatprep.subr.bf16.mxu0 0
    %1624 = vmatpush1.bf16.msra.mxu0 0
    %1625 = vmatprep.subr.bf16.mxu0 0
    %1626 = vmatpush1.bf16.msra.mxu0 0
    %1627 = vmatprep.subr.bf16.mxu0 0
    %1628 = vmatpush1.bf16.msra.mxu0 0
    %1629 = vmatprep.subr.bf16.mxu0 0
    %1630 = vmatpush1.bf16.msra.mxu0 0
    %1631 = vmatprep.subr.bf16.mxu0 0
    %1632 = vmatpush1.bf16.msra.mxu0 0
    %1633 = vmatprep.subr.bf16.mxu0 0
    %1634 = vmatpush1.bf16.msra.mxu0 0
    %1635 = vmatprep.subr.bf16.mxu0 0
    %1636 = vmatpush1.bf16.msra.mxu0 0
    %1637 = vmatprep.subr.bf16.mxu0 0
    %1638 = vmatpush1.bf16.msra.mxu0 0
    %1639 = vmatprep.subr.bf16.mxu0 0
    %1640 = vmatpush1.bf16.msra.mxu0 0
    %1641 = vmatprep.mubr.bf16.mxu0 0
    %1642 = vmatmul.mubr.bf16.gmra.mrb[0].mxu0 %v1604
    %v1643 = vpop.f32.mrb[0].mxu0
    %v1644 = vadd.f32 0.0, %v1643
    %v1645 = vpop.f32.mrb[0].mxu0
    %v1646 = vpop.f32.mrb[0].mxu0
    %v1647 = vpop.f32.mrb[0].mxu0
    %1648 = vdwg.mxu0
    %1649 = vrot.lane.b32.xlu0 %v868, 96
    %v1650 = vpop.permute.xlu0 %1649
    %v1652 = vsel %vm1263, %v1358, 0
    %v1655 = vsel %vm1365, %v1650, 0
    %1657 = vmatprep.subr.bf16.mxu0 0
    %1658 = vmatpush1.bf16.msra.mxu0 %v1655
    %1659 = vmatprep.subr.bf16.mxu0 0
    %1660 = vmatpush1.bf16.msra.mxu0 0
    %1661 = vmatprep.subr.bf16.mxu0 0
    %1662 = vmatpush1.bf16.msra.mxu0 0
    %1663 = vmatprep.subr.bf16.mxu0 0
    %1664 = vmatpush1.bf16.msra.mxu0 0
    %1665 = vmatprep.subr.bf16.mxu0 0
    %1666 = vmatpush1.bf16.msra.mxu0 0
    %1667 = vmatprep.subr.bf16.mxu0 0
    %1668 = vmatpush1.bf16.msra.mxu0 0
    %1669 = vmatprep.subr.bf16.mxu0 0
    %1670 = vmatpush1.bf16.msra.mxu0 0
    %1671 = vmatprep.subr.bf16.mxu0 0
    %1672 = vmatpush1.bf16.msra.mxu0 0
    %1673 = vmatprep.subr.bf16.mxu0 0
    %1674 = vmatpush1.bf16.msra.mxu0 0
    %1675 = vmatprep.subr.bf16.mxu0 0
    %1676 = vmatpush1.bf16.msra.mxu0 0
    %1677 = vmatprep.subr.bf16.mxu0 0
    %1678 = vmatpush1.bf16.msra.mxu0 0
    %1679 = vmatprep.subr.bf16.mxu0 0
    %1680 = vmatpush1.bf16.msra.mxu0 0
    %1681 = vmatprep.subr.bf16.mxu0 0
    %1682 = vmatpush1.bf16.msra.mxu0 0
    %1683 = vmatprep.subr.bf16.mxu0 0
    %1684 = vmatpush1.bf16.msra.mxu0 0
    %1685 = vmatprep.subr.bf16.mxu0 0
    %1686 = vmatpush1.bf16.msra.mxu0 0
    %1687 = vmatprep.subr.bf16.mxu0 0
    %1688 = vmatpush1.bf16.msra.mxu0 0
    %1689 = vmatprep.mubr.bf16.mxu0 0
    %1690 = vmatmul.mubr.bf16.gmra.mrb[0].mxu0 %v1652
    %v1691 = vpop.f32.mrb[0].mxu0
    %v1692 = vadd.f32 0.0, %v1691
    %v1693 = vpop.f32.mrb[0].mxu0
    %v1694 = vpop.f32.mrb[0].mxu0
    %v1695 = vpop.f32.mrb[0].mxu0
    %1696 = vdwg.mxu0
    %1697 = vrot.lane.b32.xlu0 %v869, 96
    %v1698 = vpop.permute.xlu0 %1697
    %v1700 = vsel %vm1263, %v1359, 0
    %v1703 = vsel %vm1365, %v1698, 0
    %1705 = vmatprep.subr.bf16.mxu0 0
    %1706 = vmatpush1.bf16.msra.mxu0 %v1703
    %1707 = vmatprep.subr.bf16.mxu0 0
    %1708 = vmatpush1.bf16.msra.mxu0 0
    %1709 = vmatprep.subr.bf16.mxu0 0
    %1710 = vmatpush1.bf16.msra.mxu0 0
    %1711 = vmatprep.subr.bf16.mxu0 0
    %1712 = vmatpush1.bf16.msra.mxu0 0
    %1713 = vmatprep.subr.bf16.mxu0 0
    %1714 = vmatpush1.bf16.msra.mxu0 0
    %1715 = vmatprep.subr.bf16.mxu0 0
    %1716 = vmatpush1.bf16.msra.mxu0 0
    %1717 = vmatprep.subr.bf16.mxu0 0
    %1718 = vmatpush1.bf16.msra.mxu0 0
    %1719 = vmatprep.subr.bf16.mxu0 0
    %1720 = vmatpush1.bf16.msra.mxu0 0
    %1721 = vmatprep.subr.bf16.mxu0 0
    %1722 = vmatpush1.bf16.msra.mxu0 0
    %1723 = vmatprep.subr.bf16.mxu0 0
    %1724 = vmatpush1.bf16.msra.mxu0 0
    %1725 = vmatprep.subr.bf16.mxu0 0
    %1726 = vmatpush1.bf16.msra.mxu0 0
    %1727 = vmatprep.subr.bf16.mxu0 0
    %1728 = vmatpush1.bf16.msra.mxu0 0
    %1729 = vmatprep.subr.bf16.mxu0 0
    %1730 = vmatpush1.bf16.msra.mxu0 0
    %1731 = vmatprep.subr.bf16.mxu0 0
    %1732 = vmatpush1.bf16.msra.mxu0 0
    %1733 = vmatprep.subr.bf16.mxu0 0
    %1734 = vmatpush1.bf16.msra.mxu0 0
    %1735 = vmatprep.subr.bf16.mxu0 0
    %1736 = vmatpush1.bf16.msra.mxu0 0
    %1737 = vmatprep.mubr.bf16.mxu0 0
    %1738 = vmatmul.mubr.bf16.gmra.mrb[0].mxu0 %v1700
    %v1739 = vpop.f32.mrb[0].mxu0
    %v1740 = vadd.f32 0.0, %v1739
    %v1741 = vpop.f32.mrb[0].mxu0
    %v1742 = vpop.f32.mrb[0].mxu0
    %v1743 = vpop.f32.mrb[0].mxu0
    %1744 = vdwg.mxu0
    %v1745 = vrot.slane %v862, 4
    %1746 = vrot.lane.b32.xlu0 %v1745, 112
    %v1747 = vpop.permute.xlu0 %1746
    %v1749 = vsel %vm873, %v1745, 0
    %v1752 = vsel %vm873, %v1747, 0
    %1754 = vmatprep.subr.bf16.mxu0 0
    %1755 = vmatpush1.bf16.xpose.msra.mxu0 %v1752
    %1756 = vmatprep.subr.bf16.mxu0 0
    %1757 = vmatpush1.bf16.xpose.msra.mxu0 0
    %1758 = vmatprep.subr.bf16.mxu0 0
    %1759 = vmatpush1.bf16.xpose.msra.mxu0 0
    %1760 = vmatprep.subr.bf16.mxu0 0
    %1761 = vmatpush1.bf16.xpose.msra.mxu0 0
    %1762 = vmatprep.subr.bf16.mxu0 0
    %1763 = vmatpush1.bf16.xpose.msra.mxu0 0
    %1764 = vmatprep.subr.bf16.mxu0 0
    %1765 = vmatpush1.bf16.xpose.msra.mxu0 0
    %1766 = vmatprep.subr.bf16.mxu0 0
    %1767 = vmatpush1.bf16.xpose.msra.mxu0 0
    %1768 = vmatprep.subr.bf16.mxu0 0
    %1769 = vmatpush1.bf16.xpose.msra.mxu0 0
    %1770 = vmatprep.subr.bf16.mxu0 0
    %1771 = vmatpush1.bf16.xpose.msra.mxu0 0
    %1772 = vmatprep.subr.bf16.mxu0 0
    %1773 = vmatpush1.bf16.xpose.msra.mxu0 0
    %1774 = vmatprep.subr.bf16.mxu0 0
    %1775 = vmatpush1.bf16.xpose.msra.mxu0 0
    %1776 = vmatprep.subr.bf16.mxu0 0
    %1777 = vmatpush1.bf16.xpose.msra.mxu0 0
    %1778 = vmatprep.subr.bf16.mxu0 0
    %1779 = vmatpush1.bf16.xpose.msra.mxu0 0
    %1780 = vmatprep.subr.bf16.mxu0 0
    %1781 = vmatpush1.bf16.xpose.msra.mxu0 0
    %1782 = vmatprep.subr.bf16.mxu0 0
    %1783 = vmatpush1.bf16.xpose.msra.mxu0 0
    %1784 = vmatprep.subr.bf16.mxu0 0
    %1785 = vmatpush1.bf16.xpose.msra.mxu0 0
    %1786 = vmatprep.mubr.bf16.mxu0 0
    %1787 = vmatmul.mubr.bf16.gmra.mrb[0].mxu0 %v1749
    %v1788 = vpop.f32.mrb[0].mxu0
    %v1789 = vadd.f32 0.0, %v1788
    %v1790 = vpop.f32.mrb[0].mxu0
    %v1791 = vpop.f32.mrb[0].mxu0
    %v1792 = vpop.f32.mrb[0].mxu0
    %1793 = vdwg.mxu0
    %v1794 = vrot.slane %v863, 4
    %1795 = vrot.lane.b32.xlu0 %v1794, 112
    %v1796 = vpop.permute.xlu0 %1795
    %v1798 = vsel %vm873, %v1794, 0
    %v1801 = vsel %vm873, %v1796, 0
    %1803 = vmatprep.subr.bf16.mxu0 0
    %1804 = vmatpush1.bf16.xpose.msra.mxu0 %v1801
    %1805 = vmatprep.subr.bf16.mxu0 0
    %1806 = vmatpush1.bf16.xpose.msra.mxu0 0
    %1807 = vmatprep.subr.bf16.mxu0 0
    %1808 = vmatpush1.bf16.xpose.msra.mxu0 0
    %1809 = vmatprep.subr.bf16.mxu0 0
    %1810 = vmatpush1.bf16.xpose.msra.mxu0 0
    %1811 = vmatprep.subr.bf16.mxu0 0
    %1812 = vmatpush1.bf16.xpose.msra.mxu0 0
    %1813 = vmatprep.subr.bf16.mxu0 0
    %1814 = vmatpush1.bf16.xpose.msra.mxu0 0
    %1815 = vmatprep.subr.bf16.mxu0 0
    %1816 = vmatpush1.bf16.xpose.msra.mxu0 0
    %1817 = vmatprep.subr.bf16.mxu0 0
    %1818 = vmatpush1.bf16.xpose.msra.mxu0 0
    %1819 = vmatprep.subr.bf16.mxu0 0
    %1820 = vmatpush1.bf16.xpose.msra.mxu0 0
    %1821 = vmatprep.subr.bf16.mxu0 0
    %1822 = vmatpush1.bf16.xpose.msra.mxu0 0
    %1823 = vmatprep.subr.bf16.mxu0 0
    %1824 = vmatpush1.bf16.xpose.msra.mxu0 0
    %1825 = vmatprep.subr.bf16.mxu0 0
    %1826 = vmatpush1.bf16.xpose.msra.mxu0 0
    %1827 = vmatprep.subr.bf16.mxu0 0
    %1828 = vmatpush1.bf16.xpose.msra.mxu0 0
    %1829 = vmatprep.subr.bf16.mxu0 0
    %1830 = vmatpush1.bf16.xpose.msra.mxu0 0
    %1831 = vmatprep.subr.bf16.mxu0 0
    %1832 = vmatpush1.bf16.xpose.msra.mxu0 0
    %1833 = vmatprep.subr.bf16.mxu0 0
    %1834 = vmatpush1.bf16.xpose.msra.mxu0 0
    %1835 = vmatprep.mubr.bf16.mxu0 0
    %1836 = vmatmul.mubr.bf16.gmra.mrb[0].mxu0 %v1798
    %v1837 = vpop.f32.mrb[0].mxu0
    %v1838 = vadd.f32 0.0, %v1837
    %v1839 = vpop.f32.mrb[0].mxu0
    %v1840 = vpop.f32.mrb[0].mxu0
    %v1841 = vpop.f32.mrb[0].mxu0
    %1842 = vdwg.mxu0
    %v1843 = vrot.slane %v864, 4
    %1844 = vrot.lane.b32.xlu0 %v1843, 112
    %v1845 = vpop.permute.xlu0 %1844
    %v1847 = vsel %vm873, %v1843, 0
    %v1850 = vsel %vm873, %v1845, 0
    %1852 = vmatprep.subr.bf16.mxu0 0
    %1853 = vmatpush1.bf16.xpose.msra.mxu0 %v1850
    %1854 = vmatprep.subr.bf16.mxu0 0
    %1855 = vmatpush1.bf16.xpose.msra.mxu0 0
    %1856 = vmatprep.subr.bf16.mxu0 0
    %1857 = vmatpush1.bf16.xpose.msra.mxu0 0
    %1858 = vmatprep.subr.bf16.mxu0 0
    %1859 = vmatpush1.bf16.xpose.msra.mxu0 0
    %1860 = vmatprep.subr.bf16.mxu0 0
    %1861 = vmatpush1.bf16.xpose.msra.mxu0 0
    %1862 = vmatprep.subr.bf16.mxu0 0
    %1863 = vmatpush1.bf16.xpose.msra.mxu0 0
    %1864 = vmatprep.subr.bf16.mxu0 0
    %1865 = vmatpush1.bf16.xpose.msra.mxu0 0
    %1866 = vmatprep.subr.bf16.mxu0 0
    %1867 = vmatpush1.bf16.xpose.msra.mxu0 0
    %1868 = vmatprep.subr.bf16.mxu0 0
    %1869 = vmatpush1.bf16.xpose.msra.mxu0 0
    %1870 = vmatprep.subr.bf16.mxu0 0
    %1871 = vmatpush1.bf16.xpose.msra.mxu0 0
    %1872 = vmatprep.subr.bf16.mxu0 0
    %1873 = vmatpush1.bf16.xpose.msra.mxu0 0
    %1874 = vmatprep.subr.bf16.mxu0 0
    %1875 = vmatpush1.bf16.xpose.msra.mxu0 0
    %1876 = vmatprep.subr.bf16.mxu0 0
    %1877 = vmatpush1.bf16.xpose.msra.mxu0 0
    %1878 = vmatprep.subr.bf16.mxu0 0
    %1879 = vmatpush1.bf16.xpose.msra.mxu0 0
    %1880 = vmatprep.subr.bf16.mxu0 0
    %1881 = vmatpush1.bf16.xpose.msra.mxu0 0
    %1882 = vmatprep.subr.bf16.mxu0 0
    %1883 = vmatpush1.bf16.xpose.msra.mxu0 0
    %1884 = vmatprep.mubr.bf16.mxu0 0
    %1885 = vmatmul.mubr.bf16.gmra.mrb[0].mxu0 %v1847
    %v1886 = vpop.f32.mrb[0].mxu0
    %v1887 = vadd.f32 0.0, %v1886
    %v1888 = vpop.f32.mrb[0].mxu0
    %v1889 = vpop.f32.mrb[0].mxu0
    %v1890 = vpop.f32.mrb[0].mxu0
    %1891 = vdwg.mxu0
    %v1892 = vrot.slane %v865, 4
    %1893 = vrot.lane.b32.xlu0 %v1892, 112
    %v1894 = vpop.permute.xlu0 %1893
    %v1896 = vsel %vm873, %v1892, 0
    %v1899 = vsel %vm873, %v1894, 0
    %1901 = vmatprep.subr.bf16.mxu0 0
    %1902 = vmatpush1.bf16.xpose.msra.mxu0 %v1899
    %1903 = vmatprep.subr.bf16.mxu0 0
    %1904 = vmatpush1.bf16.xpose.msra.mxu0 0
    %1905 = vmatprep.subr.bf16.mxu0 0
    %1906 = vmatpush1.bf16.xpose.msra.mxu0 0
    %1907 = vmatprep.subr.bf16.mxu0 0
    %1908 = vmatpush1.bf16.xpose.msra.mxu0 0
    %1909 = vmatprep.subr.bf16.mxu0 0
    %1910 = vmatpush1.bf16.xpose.msra.mxu0 0
    %1911 = vmatprep.subr.bf16.mxu0 0
    %1912 = vmatpush1.bf16.xpose.msra.mxu0 0
    %1913 = vmatprep.subr.bf16.mxu0 0
    %1914 = vmatpush1.bf16.xpose.msra.mxu0 0
    %1915 = vmatprep.subr.bf16.mxu0 0
    %1916 = vmatpush1.bf16.xpose.msra.mxu0 0
    %1917 = vmatprep.subr.bf16.mxu0 0
    %1918 = vmatpush1.bf16.xpose.msra.mxu0 0
    %1919 = vmatprep.subr.bf16.mxu0 0
    %1920 = vmatpush1.bf16.xpose.msra.mxu0 0
    %1921 = vmatprep.subr.bf16.mxu0 0
    %1922 = vmatpush1.bf16.xpose.msra.mxu0 0
    %1923 = vmatprep.subr.bf16.mxu0 0
    %1924 = vmatpush1.bf16.xpose.msra.mxu0 0
    %1925 = vmatprep.subr.bf16.mxu0 0
    %1926 = vmatpush1.bf16.xpose.msra.mxu0 0
    %1927 = vmatprep.subr.bf16.mxu0 0
    %1928 = vmatpush1.bf16.xpose.msra.mxu0 0
    %1929 = vmatprep.subr.bf16.mxu0 0
    %1930 = vmatpush1.bf16.xpose.msra.mxu0 0
    %1931 = vmatprep.subr.bf16.mxu0 0
    %1932 = vmatpush1.bf16.xpose.msra.mxu0 0
    %1933 = vmatprep.mubr.bf16.mxu0 0
    %1934 = vmatmul.mubr.bf16.gmra.mrb[0].mxu0 %v1896
    %v1935 = vpop.f32.mrb[0].mxu0
    %v1936 = vadd.f32 0.0, %v1935
    %v1937 = vpop.f32.mrb[0].mxu0
    %v1938 = vpop.f32.mrb[0].mxu0
    %v1939 = vpop.f32.mrb[0].mxu0
    %1940 = vdwg.mxu0
    %v1941 = vrot.slane %v866, 4
    %1942 = vrot.lane.b32.xlu0 %v1941, 112
    %v1943 = vpop.permute.xlu0 %1942
    %v1945 = vsel %vm873, %v1941, 0
    %v1948 = vsel %vm873, %v1943, 0
    %1950 = vmatprep.subr.bf16.mxu0 0
    %1951 = vmatpush1.bf16.xpose.msra.mxu0 %v1948
    %1952 = vmatprep.subr.bf16.mxu0 0
    %1953 = vmatpush1.bf16.xpose.msra.mxu0 0
    %1954 = vmatprep.subr.bf16.mxu0 0
    %1955 = vmatpush1.bf16.xpose.msra.mxu0 0
    %1956 = vmatprep.subr.bf16.mxu0 0
    %1957 = vmatpush1.bf16.xpose.msra.mxu0 0
    %1958 = vmatprep.subr.bf16.mxu0 0
    %1959 = vmatpush1.bf16.xpose.msra.mxu0 0
    %1960 = vmatprep.subr.bf16.mxu0 0
    %1961 = vmatpush1.bf16.xpose.msra.mxu0 0
    %1962 = vmatprep.subr.bf16.mxu0 0
    %1963 = vmatpush1.bf16.xpose.msra.mxu0 0
    %1964 = vmatprep.subr.bf16.mxu0 0
    %1965 = vmatpush1.bf16.xpose.msra.mxu0 0
    %1966 = vmatprep.subr.bf16.mxu0 0
    %1967 = vmatpush1.bf16.xpose.msra.mxu0 0
    %1968 = vmatprep.subr.bf16.mxu0 0
    %1969 = vmatpush1.bf16.xpose.msra.mxu0 0
    %1970 = vmatprep.subr.bf16.mxu0 0
    %1971 = vmatpush1.bf16.xpose.msra.mxu0 0
    %1972 = vmatprep.subr.bf16.mxu0 0
    %1973 = vmatpush1.bf16.xpose.msra.mxu0 0
    %1974 = vmatprep.subr.bf16.mxu0 0
    %1975 = vmatpush1.bf16.xpose.msra.mxu0 0
    %1976 = vmatprep.subr.bf16.mxu0 0
    %1977 = vmatpush1.bf16.xpose.msra.mxu0 0
    %1978 = vmatprep.subr.bf16.mxu0 0
    %1979 = vmatpush1.bf16.xpose.msra.mxu0 0
    %1980 = vmatprep.subr.bf16.mxu0 0
    %1981 = vmatpush1.bf16.xpose.msra.mxu0 0
    %1982 = vmatprep.mubr.bf16.mxu0 0
    %1983 = vmatmul.mubr.bf16.gmra.mrb[0].mxu0 %v1945
    %v1984 = vpop.f32.mrb[0].mxu0
    %v1985 = vadd.f32 0.0, %v1984
    %v1986 = vpop.f32.mrb[0].mxu0
    %v1987 = vpop.f32.mrb[0].mxu0
    %v1988 = vpop.f32.mrb[0].mxu0
    %1989 = vdwg.mxu0
    %v1990 = vrot.slane %v867, 4
    %1991 = vrot.lane.b32.xlu0 %v1990, 112
    %v1992 = vpop.permute.xlu0 %1991
    %v1994 = vsel %vm873, %v1990, 0
    %v1997 = vsel %vm873, %v1992, 0
    %1999 = vmatprep.subr.bf16.mxu0 0
    %2000 = vmatpush1.bf16.xpose.msra.mxu0 %v1997
    %2001 = vmatprep.subr.bf16.mxu0 0
    %2002 = vmatpush1.bf16.xpose.msra.mxu0 0
    %2003 = vmatprep.subr.bf16.mxu0 0
    %2004 = vmatpush1.bf16.xpose.msra.mxu0 0
    %2005 = vmatprep.subr.bf16.mxu0 0
    %2006 = vmatpush1.bf16.xpose.msra.mxu0 0
    %2007 = vmatprep.subr.bf16.mxu0 0
    %2008 = vmatpush1.bf16.xpose.msra.mxu0 0
    %2009 = vmatprep.subr.bf16.mxu0 0
    %2010 = vmatpush1.bf16.xpose.msra.mxu0 0
    %2011 = vmatprep.subr.bf16.mxu0 0
    %2012 = vmatpush1.bf16.xpose.msra.mxu0 0
    %2013 = vmatprep.subr.bf16.mxu0 0
    %2014 = vmatpush1.bf16.xpose.msra.mxu0 0
    %2015 = vmatprep.subr.bf16.mxu0 0
    %2016 = vmatpush1.bf16.xpose.msra.mxu0 0
    %2017 = vmatprep.subr.bf16.mxu0 0
    %2018 = vmatpush1.bf16.xpose.msra.mxu0 0
    %2019 = vmatprep.subr.bf16.mxu0 0
    %2020 = vmatpush1.bf16.xpose.msra.mxu0 0
    %2021 = vmatprep.subr.bf16.mxu0 0
    %2022 = vmatpush1.bf16.xpose.msra.mxu0 0
    %2023 = vmatprep.subr.bf16.mxu0 0
    %2024 = vmatpush1.bf16.xpose.msra.mxu0 0
    %2025 = vmatprep.subr.bf16.mxu0 0
    %2026 = vmatpush1.bf16.xpose.msra.mxu0 0
    %2027 = vmatprep.subr.bf16.mxu0 0
    %2028 = vmatpush1.bf16.xpose.msra.mxu0 0
    %2029 = vmatprep.subr.bf16.mxu0 0
    %2030 = vmatpush1.bf16.xpose.msra.mxu0 0
    %2031 = vmatprep.mubr.bf16.mxu0 0
    %2032 = vmatmul.mubr.bf16.gmra.mrb[0].mxu0 %v1994
    %v2033 = vpop.f32.mrb[0].mxu0
    %v2034 = vadd.f32 0.0, %v2033
    %v2035 = vpop.f32.mrb[0].mxu0
    %v2036 = vpop.f32.mrb[0].mxu0
    %v2037 = vpop.f32.mrb[0].mxu0
    %2038 = vdwg.mxu0
    %v2039 = vrot.slane %v868, 4
    %2040 = vrot.lane.b32.xlu0 %v2039, 112
    %v2041 = vpop.permute.xlu0 %2040
    %v2043 = vsel %vm873, %v2039, 0
    %v2046 = vsel %vm873, %v2041, 0
    %2048 = vmatprep.subr.bf16.mxu0 0
    %2049 = vmatpush1.bf16.xpose.msra.mxu0 %v2046
    %2050 = vmatprep.subr.bf16.mxu0 0
    %2051 = vmatpush1.bf16.xpose.msra.mxu0 0
    %2052 = vmatprep.subr.bf16.mxu0 0
    %2053 = vmatpush1.bf16.xpose.msra.mxu0 0
    %2054 = vmatprep.subr.bf16.mxu0 0
    %2055 = vmatpush1.bf16.xpose.msra.mxu0 0
    %2056 = vmatprep.subr.bf16.mxu0 0
    %2057 = vmatpush1.bf16.xpose.msra.mxu0 0
    %2058 = vmatprep.subr.bf16.mxu0 0
    %2059 = vmatpush1.bf16.xpose.msra.mxu0 0
    %2060 = vmatprep.subr.bf16.mxu0 0
    %2061 = vmatpush1.bf16.xpose.msra.mxu0 0
    %2062 = vmatprep.subr.bf16.mxu0 0
    %2063 = vmatpush1.bf16.xpose.msra.mxu0 0
    %2064 = vmatprep.subr.bf16.mxu0 0
    %2065 = vmatpush1.bf16.xpose.msra.mxu0 0
    %2066 = vmatprep.subr.bf16.mxu0 0
    %2067 = vmatpush1.bf16.xpose.msra.mxu0 0
    %2068 = vmatprep.subr.bf16.mxu0 0
    %2069 = vmatpush1.bf16.xpose.msra.mxu0 0
    %2070 = vmatprep.subr.bf16.mxu0 0
    %2071 = vmatpush1.bf16.xpose.msra.mxu0 0
    %2072 = vmatprep.subr.bf16.mxu0 0
    %2073 = vmatpush1.bf16.xpose.msra.mxu0 0
    %2074 = vmatprep.subr.bf16.mxu0 0
    %2075 = vmatpush1.bf16.xpose.msra.mxu0 0
    %2076 = vmatprep.subr.bf16.mxu0 0
    %2077 = vmatpush1.bf16.xpose.msra.mxu0 0
    %2078 = vmatprep.subr.bf16.mxu0 0
    %2079 = vmatpush1.bf16.xpose.msra.mxu0 0
    %2080 = vmatprep.mubr.bf16.mxu0 0
    %2081 = vmatmul.mubr.bf16.gmra.mrb[0].mxu0 %v2043
    %v2082 = vpop.f32.mrb[0].mxu0
    %v2083 = vadd.f32 0.0, %v2082
    %v2084 = vpop.f32.mrb[0].mxu0
    %v2085 = vpop.f32.mrb[0].mxu0
    %v2086 = vpop.f32.mrb[0].mxu0
    %2087 = vdwg.mxu0
    %v2088 = vrot.slane %v869, 4
    %2089 = vrot.lane.b32.xlu0 %v2088, 112
    %v2090 = vpop.permute.xlu0 %2089
    %v2092 = vsel %vm873, %v2088, 0
    %v2095 = vsel %vm873, %v2090, 0
    %2097 = vmatprep.subr.bf16.mxu0 0
    %2098 = vmatpush1.bf16.xpose.msra.mxu0 %v2095
    %2099 = vmatprep.subr.bf16.mxu0 0
    %2100 = vmatpush1.bf16.xpose.msra.mxu0 0
    %2101 = vmatprep.subr.bf16.mxu0 0
    %2102 = vmatpush1.bf16.xpose.msra.mxu0 0
    %2103 = vmatprep.subr.bf16.mxu0 0
    %2104 = vmatpush1.bf16.xpose.msra.mxu0 0
    %2105 = vmatprep.subr.bf16.mxu0 0
    %2106 = vmatpush1.bf16.xpose.msra.mxu0 0
    %2107 = vmatprep.subr.bf16.mxu0 0
    %2108 = vmatpush1.bf16.xpose.msra.mxu0 0
    %2109 = vmatprep.subr.bf16.mxu0 0
    %2110 = vmatpush1.bf16.xpose.msra.mxu0 0
    %2111 = vmatprep.subr.bf16.mxu0 0
    %2112 = vmatpush1.bf16.xpose.msra.mxu0 0
    %2113 = vmatprep.subr.bf16.mxu0 0
    %2114 = vmatpush1.bf16.xpose.msra.mxu0 0
    %2115 = vmatprep.subr.bf16.mxu0 0
    %2116 = vmatpush1.bf16.xpose.msra.mxu0 0
    %2117 = vmatprep.subr.bf16.mxu0 0
    %2118 = vmatpush1.bf16.xpose.msra.mxu0 0
    %2119 = vmatprep.subr.bf16.mxu0 0
    %2120 = vmatpush1.bf16.xpose.msra.mxu0 0
    %2121 = vmatprep.subr.bf16.mxu0 0
    %2122 = vmatpush1.bf16.xpose.msra.mxu0 0
    %2123 = vmatprep.subr.bf16.mxu0 0
    %2124 = vmatpush1.bf16.xpose.msra.mxu0 0
    %2125 = vmatprep.subr.bf16.mxu0 0
    %2126 = vmatpush1.bf16.xpose.msra.mxu0 0
    %2127 = vmatprep.subr.bf16.mxu0 0
    %2128 = vmatpush1.bf16.xpose.msra.mxu0 0
    %2129 = vmatprep.mubr.bf16.mxu0 0
    %2130 = vmatmul.mubr.bf16.gmra.mrb[0].mxu0 %v2092
    %v2131 = vpop.f32.mrb[0].mxu0
    %v2132 = vadd.f32 0.0, %v2131
    %v2133 = vpop.f32.mrb[0].mxu0
    %v2134 = vpop.f32.mrb[0].mxu0
    %v2135 = vpop.f32.mrb[0].mxu0
    %2136 = vdwg.mxu0
    %v2137 = vsel %vm1263, %v1789, -inf
    %2138 = vmax.xlane.f32.xlu0 %v2137
    %v2139 = vpop.xlane.xlu0 %2138
    %v2140 = vsel %vm1263, %v1838, -inf
    %2141 = vmax.xlane.f32.xlu0 %v2140
    %v2142 = vpop.xlane.xlu0 %2141
    %v2143 = vsel %vm1263, %v1887, -inf
    %2144 = vmax.xlane.f32.xlu0 %v2143
    %v2145 = vpop.xlane.xlu0 %2144
    %v2146 = vsel %vm1263, %v1936, -inf
    %2147 = vmax.xlane.f32.xlu0 %v2146
    %v2148 = vpop.xlane.xlu0 %2147
    %v2149 = vsel %vm1263, %v1985, -inf
    %2150 = vmax.xlane.f32.xlu0 %v2149
    %v2151 = vpop.xlane.xlu0 %2150
    %v2152 = vsel %vm1263, %v2034, -inf
    %2153 = vmax.xlane.f32.xlu0 %v2152
    %v2154 = vpop.xlane.xlu0 %2153
    %v2155 = vsel %vm1263, %v2083, -inf
    %2156 = vmax.xlane.f32.xlu0 %v2155
    %v2157 = vpop.xlane.xlu0 %2156
    %v2158 = vsel %vm1263, %v2132, -inf
    %2159 = vmax.xlane.f32.xlu0 %v2158
    %v2160 = vpop.xlane.xlu0 %2159
    %v2161 = vsub.f32 %v1789, %v2139
    %v2162 = vsub.f32 %v1838, %v2142
    %v2163 = vsub.f32 %v1887, %v2145
    %v2164 = vsub.f32 %v1936, %v2148
    %v2165 = vsub.f32 %v1985, %v2151
    %v2166 = vsub.f32 %v2034, %v2154
    %v2167 = vsub.f32 %v2083, %v2157
    %v2168 = vsub.f32 %v2132, %v2160
    %v2169 = vmul.f32 %v2161, 1.442695
    %v2170 = vpow.pop %v2169
    %v2171 = vmul.f32 %v2162, 1.442695
    %v2172 = vpow.pop %v2171
    %v2173 = vmul.f32 %v2163, 1.442695
    %v2174 = vpow.pop %v2173
    %v2175 = vmul.f32 %v2164, 1.442695
    %v2176 = vpow.pop %v2175
    %v2177 = vmul.f32 %v2165, 1.442695
    %v2178 = vpow.pop %v2177
    %v2179 = vmul.f32 %v2166, 1.442695
    %v2180 = vpow.pop %v2179
    %v2181 = vmul.f32 %v2167, 1.442695
    %v2182 = vpow.pop %v2181
    %v2183 = vmul.f32 %v2168, 1.442695
    %v2184 = vpow.pop %v2183
    %v2185 = vsel %vm1263, %v2170, 0.0
    %2186 = vadd.xlane.f32.xlu0 %v2185
    %v2187 = vpop.xlane.xlu0 %2186
    %v2188 = vsel %vm1263, %v2172, 0.0
    %2189 = vadd.xlane.f32.xlu0 %v2188
    %v2190 = vpop.xlane.xlu0 %2189
    %v2191 = vsel %vm1263, %v2174, 0.0
    %2192 = vadd.xlane.f32.xlu0 %v2191
    %v2193 = vpop.xlane.xlu0 %2192
    %v2194 = vsel %vm1263, %v2176, 0.0
    %2195 = vadd.xlane.f32.xlu0 %v2194
    %v2196 = vpop.xlane.xlu0 %2195
    %v2197 = vsel %vm1263, %v2178, 0.0
    %2198 = vadd.xlane.f32.xlu0 %v2197
    %v2199 = vpop.xlane.xlu0 %2198
    %v2200 = vsel %vm1263, %v2180, 0.0
    %2201 = vadd.xlane.f32.xlu0 %v2200
    %v2202 = vpop.xlane.xlu0 %2201
    %v2203 = vsel %vm1263, %v2182, 0.0
    %2204 = vadd.xlane.f32.xlu0 %v2203
    %v2205 = vpop.xlane.xlu0 %2204
    %v2206 = vsel %vm1263, %v2184, 0.0
    %2207 = vadd.xlane.f32.xlu0 %v2206
    %v2208 = vpop.xlane.xlu0 %2207
    %v2209 = vrcp.pop %v2187
    %v2210 = vrcp.pop %v2190
    %v2211 = vrcp.pop %v2193
    %v2212 = vrcp.pop %v2196
    %v2213 = vrcp.pop %v2199
    %v2214 = vrcp.pop %v2202
    %v2215 = vrcp.pop %v2205
    %v2216 = vrcp.pop %v2208
    %v2217 = vmul.f32 %v2170, %v2209
    %v2218 = vmul.f32 %v2172, %v2210
    %v2219 = vmul.f32 %v2174, %v2211
    %v2220 = vmul.f32 %v2176, %v2212
    %v2221 = vmul.f32 %v2178, %v2213
    %v2222 = vmul.f32 %v2180, %v2214
    %v2223 = vmul.f32 %v2182, %v2215
    %v2224 = vmul.f32 %v2184, %v2216
    %v2225 = vpack.c.bf16 %v2217, %v2217
    %v2226 = vpack.c.bf16 %v2218, %v2218
    %v2227 = vpack.c.bf16 %v2219, %v2219
    %v2228 = vpack.c.bf16 %v2220, %v2220
    %v2229 = vpack.c.bf16 %v2221, %v2221
    %v2230 = vpack.c.bf16 %v2222, %v2222
    %v2231 = vpack.c.bf16 %v2223, %v2223
    %v2232 = vpack.c.bf16 %v2224, %v2224
    %2233 = vrot.lane.b32.xlu0 %v1745, 96
    %v2234 = vpop.permute.xlu0 %2233
    %v2236 = vsel %vm1263, %v2225, 0
    %v2239 = vsel %vm1365, %v2234, 0
    %2241 = vmatprep.subr.bf16.mxu0 0
    %2242 = vmatpush1.bf16.msra.mxu0 %v2239
    %2243 = vmatprep.subr.bf16.mxu0 0
    %2244 = vmatpush1.bf16.msra.mxu0 0
    %2245 = vmatprep.subr.bf16.mxu0 0
    %2246 = vmatpush1.bf16.msra.mxu0 0
    %2247 = vmatprep.subr.bf16.mxu0 0
    %2248 = vmatpush1.bf16.msra.mxu0 0
    %2249 = vmatprep.subr.bf16.mxu0 0
    %2250 = vmatpush1.bf16.msra.mxu0 0
    %2251 = vmatprep.subr.bf16.mxu0 0
    %2252 = vmatpush1.bf16.msra.mxu0 0
    %2253 = vmatprep.subr.bf16.mxu0 0
    %2254 = vmatpush1.bf16.msra.mxu0 0
    %2255 = vmatprep.subr.bf16.mxu0 0
    %2256 = vmatpush1.bf16.msra.mxu0 0
    %2257 = vmatprep.subr.bf16.mxu0 0
    %2258 = vmatpush1.bf16.msra.mxu0 0
    %2259 = vmatprep.subr.bf16.mxu0 0
    %2260 = vmatpush1.bf16.msra.mxu0 0
    %2261 = vmatprep.subr.bf16.mxu0 0
    %2262 = vmatpush1.bf16.msra.mxu0 0
    %2263 = vmatprep.subr.bf16.mxu0 0
    %2264 = vmatpush1.bf16.msra.mxu0 0
    %2265 = vmatprep.subr.bf16.mxu0 0
    %2266 = vmatpush1.bf16.msra.mxu0 0
    %2267 = vmatprep.subr.bf16.mxu0 0
    %2268 = vmatpush1.bf16.msra.mxu0 0
    %2269 = vmatprep.subr.bf16.mxu0 0
    %2270 = vmatpush1.bf16.msra.mxu0 0
    %2271 = vmatprep.subr.bf16.mxu0 0
    %2272 = vmatpush1.bf16.msra.mxu0 0
    %2273 = vmatprep.mubr.bf16.mxu0 0
    %2274 = vmatmul.mubr.bf16.gmra.mrb[0].mxu0 %v2236
    %v2275 = vpop.f32.mrb[0].mxu0
    %v2276 = vadd.f32 0.0, %v2275
    %v2277 = vpop.f32.mrb[0].mxu0
    %v2278 = vpop.f32.mrb[0].mxu0
    %v2279 = vpop.f32.mrb[0].mxu0
    %2280 = vdwg.mxu0
    %2281 = vrot.lane.b32.xlu0 %v1794, 96
    %v2282 = vpop.permute.xlu0 %2281
    %v2284 = vsel %vm1263, %v2226, 0
    %v2287 = vsel %vm1365, %v2282, 0
    %2289 = vmatprep.subr.bf16.mxu0 0
    %2290 = vmatpush1.bf16.msra.mxu0 %v2287
    %2291 = vmatprep.subr.bf16.mxu0 0
    %2292 = vmatpush1.bf16.msra.mxu0 0
    %2293 = vmatprep.subr.bf16.mxu0 0
    %2294 = vmatpush1.bf16.msra.mxu0 0
    %2295 = vmatprep.subr.bf16.mxu0 0
    %2296 = vmatpush1.bf16.msra.mxu0 0
    %2297 = vmatprep.subr.bf16.mxu0 0
    %2298 = vmatpush1.bf16.msra.mxu0 0
    %2299 = vmatprep.subr.bf16.mxu0 0
    %2300 = vmatpush1.bf16.msra.mxu0 0
    %2301 = vmatprep.subr.bf16.mxu0 0
    %2302 = vmatpush1.bf16.msra.mxu0 0
    %2303 = vmatprep.subr.bf16.mxu0 0
    %2304 = vmatpush1.bf16.msra.mxu0 0
    %2305 = vmatprep.subr.bf16.mxu0 0
    %2306 = vmatpush1.bf16.msra.mxu0 0
    %2307 = vmatprep.subr.bf16.mxu0 0
    %2308 = vmatpush1.bf16.msra.mxu0 0
    %2309 = vmatprep.subr.bf16.mxu0 0
    %2310 = vmatpush1.bf16.msra.mxu0 0
    %2311 = vmatprep.subr.bf16.mxu0 0
    %2312 = vmatpush1.bf16.msra.mxu0 0
    %2313 = vmatprep.subr.bf16.mxu0 0
    %2314 = vmatpush1.bf16.msra.mxu0 0
    %2315 = vmatprep.subr.bf16.mxu0 0
    %2316 = vmatpush1.bf16.msra.mxu0 0
    %2317 = vmatprep.subr.bf16.mxu0 0
    %2318 = vmatpush1.bf16.msra.mxu0 0
    %2319 = vmatprep.subr.bf16.mxu0 0
    %2320 = vmatpush1.bf16.msra.mxu0 0
    %2321 = vmatprep.mubr.bf16.mxu0 0
    %2322 = vmatmul.mubr.bf16.gmra.mrb[0].mxu0 %v2284
    %v2323 = vpop.f32.mrb[0].mxu0
    %v2324 = vadd.f32 0.0, %v2323
    %v2325 = vpop.f32.mrb[0].mxu0
    %v2326 = vpop.f32.mrb[0].mxu0
    %v2327 = vpop.f32.mrb[0].mxu0
    %2328 = vdwg.mxu0
    %2329 = vrot.lane.b32.xlu0 %v1843, 96
    %v2330 = vpop.permute.xlu0 %2329
    %v2332 = vsel %vm1263, %v2227, 0
    %v2335 = vsel %vm1365, %v2330, 0
    %2337 = vmatprep.subr.bf16.mxu0 0
    %2338 = vmatpush1.bf16.msra.mxu0 %v2335
    %2339 = vmatprep.subr.bf16.mxu0 0
    %2340 = vmatpush1.bf16.msra.mxu0 0
    %2341 = vmatprep.subr.bf16.mxu0 0
    %2342 = vmatpush1.bf16.msra.mxu0 0
    %2343 = vmatprep.subr.bf16.mxu0 0
    %2344 = vmatpush1.bf16.msra.mxu0 0
    %2345 = vmatprep.subr.bf16.mxu0 0
    %2346 = vmatpush1.bf16.msra.mxu0 0
    %2347 = vmatprep.subr.bf16.mxu0 0
    %2348 = vmatpush1.bf16.msra.mxu0 0
    %2349 = vmatprep.subr.bf16.mxu0 0
    %2350 = vmatpush1.bf16.msra.mxu0 0
    %2351 = vmatprep.subr.bf16.mxu0 0
    %2352 = vmatpush1.bf16.msra.mxu0 0
    %2353 = vmatprep.subr.bf16.mxu0 0
    %2354 = vmatpush1.bf16.msra.mxu0 0
    %2355 = vmatprep.subr.bf16.mxu0 0
    %2356 = vmatpush1.bf16.msra.mxu0 0
    %2357 = vmatprep.subr.bf16.mxu0 0
    %2358 = vmatpush1.bf16.msra.mxu0 0
    %2359 = vmatprep.subr.bf16.mxu0 0
    %2360 = vmatpush1.bf16.msra.mxu0 0
    %2361 = vmatprep.subr.bf16.mxu0 0
    %2362 = vmatpush1.bf16.msra.mxu0 0
    %2363 = vmatprep.subr.bf16.mxu0 0
    %2364 = vmatpush1.bf16.msra.mxu0 0
    %2365 = vmatprep.subr.bf16.mxu0 0
    %2366 = vmatpush1.bf16.msra.mxu0 0
    %2367 = vmatprep.subr.bf16.mxu0 0
    %2368 = vmatpush1.bf16.msra.mxu0 0
    %2369 = vmatprep.mubr.bf16.mxu0 0
    %2370 = vmatmul.mubr.bf16.gmra.mrb[0].mxu0 %v2332
    %v2371 = vpop.f32.mrb[0].mxu0
    %v2372 = vadd.f32 0.0, %v2371
    %v2373 = vpop.f32.mrb[0].mxu0
    %v2374 = vpop.f32.mrb[0].mxu0
    %v2375 = vpop.f32.mrb[0].mxu0
    %2376 = vdwg.mxu0
    %2377 = vrot.lane.b32.xlu0 %v1892, 96
    %v2378 = vpop.permute.xlu0 %2377
    %v2380 = vsel %vm1263, %v2228, 0
    %v2383 = vsel %vm1365, %v2378, 0
    %2385 = vmatprep.subr.bf16.mxu0 0
    %2386 = vmatpush1.bf16.msra.mxu0 %v2383
    %2387 = vmatprep.subr.bf16.mxu0 0
    %2388 = vmatpush1.bf16.msra.mxu0 0
    %2389 = vmatprep.subr.bf16.mxu0 0
    %2390 = vmatpush1.bf16.msra.mxu0 0
    %2391 = vmatprep.subr.bf16.mxu0 0
    %2392 = vmatpush1.bf16.msra.mxu0 0
    %2393 = vmatprep.subr.bf16.mxu0 0
    %2394 = vmatpush1.bf16.msra.mxu0 0
    %2395 = vmatprep.subr.bf16.mxu0 0
    %2396 = vmatpush1.bf16.msra.mxu0 0
    %2397 = vmatprep.subr.bf16.mxu0 0
    %2398 = vmatpush1.bf16.msra.mxu0 0
    %2399 = vmatprep.subr.bf16.mxu0 0
    %2400 = vmatpush1.bf16.msra.mxu0 0
    %2401 = vmatprep.subr.bf16.mxu0 0
    %2402 = vmatpush1.bf16.msra.mxu0 0
    %2403 = vmatprep.subr.bf16.mxu0 0
    %2404 = vmatpush1.bf16.msra.mxu0 0
    %2405 = vmatprep.subr.bf16.mxu0 0
    %2406 = vmatpush1.bf16.msra.mxu0 0
    %2407 = vmatprep.subr.bf16.mxu0 0
    %2408 = vmatpush1.bf16.msra.mxu0 0
    %2409 = vmatprep.subr.bf16.mxu0 0
    %2410 = vmatpush1.bf16.msra.mxu0 0
    %2411 = vmatprep.subr.bf16.mxu0 0
    %2412 = vmatpush1.bf16.msra.mxu0 0
    %2413 = vmatprep.subr.bf16.mxu0 0
    %2414 = vmatpush1.bf16.msra.mxu0 0
    %2415 = vmatprep.subr.bf16.mxu0 0
    %2416 = vmatpush1.bf16.msra.mxu0 0
    %2417 = vmatprep.mubr.bf16.mxu0 0
    %2418 = vmatmul.mubr.bf16.gmra.mrb[0].mxu0 %v2380
    %v2419 = vpop.f32.mrb[0].mxu0
    %v2420 = vadd.f32 0.0, %v2419
    %v2421 = vpop.f32.mrb[0].mxu0
    %v2422 = vpop.f32.mrb[0].mxu0
    %v2423 = vpop.f32.mrb[0].mxu0
    %2424 = vdwg.mxu0
    %2425 = vrot.lane.b32.xlu0 %v1941, 96
    %v2426 = vpop.permute.xlu0 %2425
    %v2428 = vsel %vm1263, %v2229, 0
    %v2431 = vsel %vm1365, %v2426, 0
    %2433 = vmatprep.subr.bf16.mxu0 0
    %2434 = vmatpush1.bf16.msra.mxu0 %v2431
    %2435 = vmatprep.subr.bf16.mxu0 0
    %2436 = vmatpush1.bf16.msra.mxu0 0
    %2437 = vmatprep.subr.bf16.mxu0 0
    %2438 = vmatpush1.bf16.msra.mxu0 0
    %2439 = vmatprep.subr.bf16.mxu0 0
    %2440 = vmatpush1.bf16.msra.mxu0 0
    %2441 = vmatprep.subr.bf16.mxu0 0
    %2442 = vmatpush1.bf16.msra.mxu0 0
    %2443 = vmatprep.subr.bf16.mxu0 0
    %2444 = vmatpush1.bf16.msra.mxu0 0
    %2445 = vmatprep.subr.bf16.mxu0 0
    %2446 = vmatpush1.bf16.msra.mxu0 0
    %2447 = vmatprep.subr.bf16.mxu0 0
    %2448 = vmatpush1.bf16.msra.mxu0 0
    %2449 = vmatprep.subr.bf16.mxu0 0
    %2450 = vmatpush1.bf16.msra.mxu0 0
    %2451 = vmatprep.subr.bf16.mxu0 0
    %2452 = vmatpush1.bf16.msra.mxu0 0
    %2453 = vmatprep.subr.bf16.mxu0 0
    %2454 = vmatpush1.bf16.msra.mxu0 0
    %2455 = vmatprep.subr.bf16.mxu0 0
    %2456 = vmatpush1.bf16.msra.mxu0 0
    %2457 = vmatprep.subr.bf16.mxu0 0
    %2458 = vmatpush1.bf16.msra.mxu0 0
    %2459 = vmatprep.subr.bf16.mxu0 0
    %2460 = vmatpush1.bf16.msra.mxu0 0
    %2461 = vmatprep.subr.bf16.mxu0 0
    %2462 = vmatpush1.bf16.msra.mxu0 0
    %2463 = vmatprep.subr.bf16.mxu0 0
    %2464 = vmatpush1.bf16.msra.mxu0 0
    %2465 = vmatprep.mubr.bf16.mxu0 0
    %2466 = vmatmul.mubr.bf16.gmra.mrb[0].mxu0 %v2428
    %v2467 = vpop.f32.mrb[0].mxu0
    %v2468 = vadd.f32 0.0, %v2467
    %v2469 = vpop.f32.mrb[0].mxu0
    %v2470 = vpop.f32.mrb[0].mxu0
    %v2471 = vpop.f32.mrb[0].mxu0
    %2472 = vdwg.mxu0
    %2473 = vrot.lane.b32.xlu0 %v1990, 96
    %v2474 = vpop.permute.xlu0 %2473
    %v2476 = vsel %vm1263, %v2230, 0
    %v2479 = vsel %vm1365, %v2474, 0
    %2481 = vmatprep.subr.bf16.mxu0 0
    %2482 = vmatpush1.bf16.msra.mxu0 %v2479
    %2483 = vmatprep.subr.bf16.mxu0 0
    %2484 = vmatpush1.bf16.msra.mxu0 0
    %2485 = vmatprep.subr.bf16.mxu0 0
    %2486 = vmatpush1.bf16.msra.mxu0 0
    %2487 = vmatprep.subr.bf16.mxu0 0
    %2488 = vmatpush1.bf16.msra.mxu0 0
    %2489 = vmatprep.subr.bf16.mxu0 0
    %2490 = vmatpush1.bf16.msra.mxu0 0
    %2491 = vmatprep.subr.bf16.mxu0 0
    %2492 = vmatpush1.bf16.msra.mxu0 0
    %2493 = vmatprep.subr.bf16.mxu0 0
    %2494 = vmatpush1.bf16.msra.mxu0 0
    %2495 = vmatprep.subr.bf16.mxu0 0
    %2496 = vmatpush1.bf16.msra.mxu0 0
    %2497 = vmatprep.subr.bf16.mxu0 0
    %2498 = vmatpush1.bf16.msra.mxu0 0
    %2499 = vmatprep.subr.bf16.mxu0 0
    %2500 = vmatpush1.bf16.msra.mxu0 0
    %2501 = vmatprep.subr.bf16.mxu0 0
    %2502 = vmatpush1.bf16.msra.mxu0 0
    %2503 = vmatprep.subr.bf16.mxu0 0
    %2504 = vmatpush1.bf16.msra.mxu0 0
    %2505 = vmatprep.subr.bf16.mxu0 0
    %2506 = vmatpush1.bf16.msra.mxu0 0
    %2507 = vmatprep.subr.bf16.mxu0 0
    %2508 = vmatpush1.bf16.msra.mxu0 0
    %2509 = vmatprep.subr.bf16.mxu0 0
    %2510 = vmatpush1.bf16.msra.mxu0 0
    %2511 = vmatprep.subr.bf16.mxu0 0
    %2512 = vmatpush1.bf16.msra.mxu0 0
    %2513 = vmatprep.mubr.bf16.mxu0 0
    %2514 = vmatmul.mubr.bf16.gmra.mrb[0].mxu0 %v2476
    %v2515 = vpop.f32.mrb[0].mxu0
    %v2516 = vadd.f32 0.0, %v2515
    %v2517 = vpop.f32.mrb[0].mxu0
    %v2518 = vpop.f32.mrb[0].mxu0
    %v2519 = vpop.f32.mrb[0].mxu0
    %2520 = vdwg.mxu0
    %2521 = vrot.lane.b32.xlu0 %v2039, 96
    %v2522 = vpop.permute.xlu0 %2521
    %v2524 = vsel %vm1263, %v2231, 0
    %v2527 = vsel %vm1365, %v2522, 0
    %2529 = vmatprep.subr.bf16.mxu0 0
    %2530 = vmatpush1.bf16.msra.mxu0 %v2527
    %2531 = vmatprep.subr.bf16.mxu0 0
    %2532 = vmatpush1.bf16.msra.mxu0 0
    %2533 = vmatprep.subr.bf16.mxu0 0
    %2534 = vmatpush1.bf16.msra.mxu0 0
    %2535 = vmatprep.subr.bf16.mxu0 0
    %2536 = vmatpush1.bf16.msra.mxu0 0
    %2537 = vmatprep.subr.bf16.mxu0 0
    %2538 = vmatpush1.bf16.msra.mxu0 0
    %2539 = vmatprep.subr.bf16.mxu0 0
    %2540 = vmatpush1.bf16.msra.mxu0 0
    %2541 = vmatprep.subr.bf16.mxu0 0
    %2542 = vmatpush1.bf16.msra.mxu0 0
    %2543 = vmatprep.subr.bf16.mxu0 0
    %2544 = vmatpush1.bf16.msra.mxu0 0
    %2545 = vmatprep.subr.bf16.mxu0 0
    %2546 = vmatpush1.bf16.msra.mxu0 0
    %2547 = vmatprep.subr.bf16.mxu0 0
    %2548 = vmatpush1.bf16.msra.mxu0 0
    %2549 = vmatprep.subr.bf16.mxu0 0
    %2550 = vmatpush1.bf16.msra.mxu0 0
    %2551 = vmatprep.subr.bf16.mxu0 0
    %2552 = vmatpush1.bf16.msra.mxu0 0
    %2553 = vmatprep.subr.bf16.mxu0 0
    %2554 = vmatpush1.bf16.msra.mxu0 0
    %2555 = vmatprep.subr.bf16.mxu0 0
    %2556 = vmatpush1.bf16.msra.mxu0 0
    %2557 = vmatprep.subr.bf16.mxu0 0
    %2558 = vmatpush1.bf16.msra.mxu0 0
    %2559 = vmatprep.subr.bf16.mxu0 0
    %2560 = vmatpush1.bf16.msra.mxu0 0
    %2561 = vmatprep.mubr.bf16.mxu0 0
    %2562 = vmatmul.mubr.bf16.gmra.mrb[0].mxu0 %v2524
    %v2563 = vpop.f32.mrb[0].mxu0
    %v2564 = vadd.f32 0.0, %v2563
    %v2565 = vpop.f32.mrb[0].mxu0
    %v2566 = vpop.f32.mrb[0].mxu0
    %v2567 = vpop.f32.mrb[0].mxu0
    %2568 = vdwg.mxu0
    %2569 = vrot.lane.b32.xlu0 %v2088, 96
    %v2570 = vpop.permute.xlu0 %2569
    %v2572 = vsel %vm1263, %v2232, 0
    %v2575 = vsel %vm1365, %v2570, 0
    %2577 = vmatprep.subr.bf16.mxu0 0
    %2578 = vmatpush1.bf16.msra.mxu0 %v2575
    %2579 = vmatprep.subr.bf16.mxu0 0
    %2580 = vmatpush1.bf16.msra.mxu0 0
    %2581 = vmatprep.subr.bf16.mxu0 0
    %2582 = vmatpush1.bf16.msra.mxu0 0
    %2583 = vmatprep.subr.bf16.mxu0 0
    %2584 = vmatpush1.bf16.msra.mxu0 0
    %2585 = vmatprep.subr.bf16.mxu0 0
    %2586 = vmatpush1.bf16.msra.mxu0 0
    %2587 = vmatprep.subr.bf16.mxu0 0
    %2588 = vmatpush1.bf16.msra.mxu0 0
    %2589 = vmatprep.subr.bf16.mxu0 0
    %2590 = vmatpush1.bf16.msra.mxu0 0
    %2591 = vmatprep.subr.bf16.mxu0 0
    %2592 = vmatpush1.bf16.msra.mxu0 0
    %2593 = vmatprep.subr.bf16.mxu0 0
    %2594 = vmatpush1.bf16.msra.mxu0 0
    %2595 = vmatprep.subr.bf16.mxu0 0
    %2596 = vmatpush1.bf16.msra.mxu0 0
    %2597 = vmatprep.subr.bf16.mxu0 0
    %2598 = vmatpush1.bf16.msra.mxu0 0
    %2599 = vmatprep.subr.bf16.mxu0 0
    %2600 = vmatpush1.bf16.msra.mxu0 0
    %2601 = vmatprep.subr.bf16.mxu0 0
    %2602 = vmatpush1.bf16.msra.mxu0 0
    %2603 = vmatprep.subr.bf16.mxu0 0
    %2604 = vmatpush1.bf16.msra.mxu0 0
    %2605 = vmatprep.subr.bf16.mxu0 0
    %2606 = vmatpush1.bf16.msra.mxu0 0
    %2607 = vmatprep.subr.bf16.mxu0 0
    %2608 = vmatpush1.bf16.msra.mxu0 0
    %2609 = vmatprep.mubr.bf16.mxu0 0
    %2610 = vmatmul.mubr.bf16.gmra.mrb[0].mxu0 %v2572
    %v2611 = vpop.f32.mrb[0].mxu0
    %v2612 = vadd.f32 0.0, %v2611
    %v2613 = vpop.f32.mrb[0].mxu0
    %v2614 = vpop.f32.mrb[0].mxu0
    %v2615 = vpop.f32.mrb[0].mxu0
    %2616 = vdwg.mxu0
    %v2617 = vpack.c.bf16 %v2276, %v1404
    %v2618 = vpack.c.bf16 %v2324, %v1452
    %v2619 = vpack.c.bf16 %v2372, %v1500
    %v2620 = vpack.c.bf16 %v2420, %v1548
    %v2621 = vpack.c.bf16 %v2468, %v1596
    %v2622 = vpack.c.bf16 %v2516, %v1644
    %v2623 = vpack.c.bf16 %v2564, %v1692
    %v2624 = vpack.c.bf16 %v2612, %v1740
    %v2625 = vld [vmem:[%s2] sm:$0xf]
    %v2626 = vld [vmem:[%s2 + $0x4] sm:$0xf]
    %v2627 = vld [vmem:[%s2 + $0x8] sm:$0xf]
    %v2628 = vld [vmem:[%s2 + $0xc] sm:$0xf]
    %v2629 = vld [vmem:[%s2 + $0x10] sm:$0xf]
    %v2630 = vld [vmem:[%s2 + $0x14] sm:$0xf]
    %v2631 = vld [vmem:[%s2 + $0x18] sm:$0xf]
    %v2632 = vld [vmem:[%s2 + $0x1c] sm:$0xf]
    %v2633 = vld [vmem:[%s2 + $0x20] sm:$0xf]
    %v2634 = vld [vmem:[%s2 + $0x24] sm:$0xf]
    %v2635 = vld [vmem:[%s2 + $0x28] sm:$0xf]
    %v2636 = vld [vmem:[%s2 + $0x2c] sm:$0xf]
    %v2637 = vld [vmem:[%s2 + $0x30] sm:$0xf]
    %v2638 = vld [vmem:[%s2 + $0x34] sm:$0xf]
    %v2639 = vld [vmem:[%s2 + $0x38] sm:$0xf]
    %v2640 = vld [vmem:[%s2 + $0x3c] sm:$0xf]
    %v2643 = vunpack.c.l.b16 %v2625
    %v2644 = vunpack.c.l.b16 %v2626
    %v2645 = vpack.c.b16 %v2644, %v2643
    %v2648 = vsel %vm873, %v2617, 0
    %2650 = vmatprep.subr.bf16.mxu0 0
    %2651 = vmatpush1.bf16.msra.mxu0 %v2645
    %2652 = vmatprep.subr.bf16.mxu0 0
    %2653 = vmatpush1.bf16.msra.mxu0 0
    %2654 = vmatprep.subr.bf16.mxu0 0
    %2655 = vmatpush1.bf16.msra.mxu0 0
    %2656 = vmatprep.subr.bf16.mxu0 0
    %2657 = vmatpush1.bf16.msra.mxu0 0
    %2658 = vmatprep.subr.bf16.mxu0 0
    %2659 = vmatpush1.bf16.msra.mxu0 0
    %2660 = vmatprep.subr.bf16.mxu0 0
    %2661 = vmatpush1.bf16.msra.mxu0 0
    %2662 = vmatprep.subr.bf16.mxu0 0
    %2663 = vmatpush1.bf16.msra.mxu0 0
    %2664 = vmatprep.subr.bf16.mxu0 0
    %2665 = vmatpush1.bf16.msra.mxu0 0
    %2666 = vmatprep.subr.bf16.mxu0 0
    %2667 = vmatpush1.bf16.msra.mxu0 0
    %2668 = vmatprep.subr.bf16.mxu0 0
    %2669 = vmatpush1.bf16.msra.mxu0 0
    %2670 = vmatprep.subr.bf16.mxu0 0
    %2671 = vmatpush1.bf16.msra.mxu0 0
    %2672 = vmatprep.subr.bf16.mxu0 0
    %2673 = vmatpush1.bf16.msra.mxu0 0
    %2674 = vmatprep.subr.bf16.mxu0 0
    %2675 = vmatpush1.bf16.msra.mxu0 0
    %2676 = vmatprep.subr.bf16.mxu0 0
    %2677 = vmatpush1.bf16.msra.mxu0 0
    %2678 = vmatprep.subr.bf16.mxu0 0
    %2679 = vmatpush1.bf16.msra.mxu0 0
    %2680 = vmatprep.subr.bf16.mxu0 0
    %2681 = vmatpush1.bf16.msra.mxu0 0
    %2682 = vmatprep.mubr.bf16.mxu0 0
    %2683 = vmatmul.mubr.bf16.gmra.mrb[0].mxu0 %v2648
    %v2684 = vpop.f32.mrb[0].mxu0
    %v2685 = vadd.f32 0.0, %v2684
    %v2686 = vpop.f32.mrb[0].mxu0
    %v2687 = vpop.f32.mrb[0].mxu0
    %v2688 = vadd.f32 0.0, %v2687
    %v2689 = vpop.f32.mrb[0].mxu0
    %2690 = vdwg.mxu0
    %v2693 = vunpack.c.l.b16 %v2627
    %v2694 = vunpack.c.l.b16 %v2628
    %v2695 = vpack.c.b16 %v2694, %v2693
    %v2698 = vsel %vm873, %v2618, 0
    %2700 = vmatprep.subr.bf16.mxu0 0
    %2701 = vmatpush1.bf16.msra.mxu0 %v2695
    %2702 = vmatprep.subr.bf16.mxu0 0
    %2703 = vmatpush1.bf16.msra.mxu0 0
    %2704 = vmatprep.subr.bf16.mxu0 0
    %2705 = vmatpush1.bf16.msra.mxu0 0
    %2706 = vmatprep.subr.bf16.mxu0 0
    %2707 = vmatpush1.bf16.msra.mxu0 0
    %2708 = vmatprep.subr.bf16.mxu0 0
    %2709 = vmatpush1.bf16.msra.mxu0 0
    %2710 = vmatprep.subr.bf16.mxu0 0
    %2711 = vmatpush1.bf16.msra.mxu0 0
    %2712 = vmatprep.subr.bf16.mxu0 0
    %2713 = vmatpush1.bf16.msra.mxu0 0
    %2714 = vmatprep.subr.bf16.mxu0 0
    %2715 = vmatpush1.bf16.msra.mxu0 0
    %2716 = vmatprep.subr.bf16.mxu0 0
    %2717 = vmatpush1.bf16.msra.mxu0 0
    %2718 = vmatprep.subr.bf16.mxu0 0
    %2719 = vmatpush1.bf16.msra.mxu0 0
    %2720 = vmatprep.subr.bf16.mxu0 0
    %2721 = vmatpush1.bf16.msra.mxu0 0
    %2722 = vmatprep.subr.bf16.mxu0 0
    %2723 = vmatpush1.bf16.msra.mxu0 0
    %2724 = vmatprep.subr.bf16.mxu0 0
    %2725 = vmatpush1.bf16.msra.mxu0 0
    %2726 = vmatprep.subr.bf16.mxu0 0
    %2727 = vmatpush1.bf16.msra.mxu0 0
    %2728 = vmatprep.subr.bf16.mxu0 0
    %2729 = vmatpush1.bf16.msra.mxu0 0
    %2730 = vmatprep.subr.bf16.mxu0 0
    %2731 = vmatpush1.bf16.msra.mxu0 0
    %2732 = vmatprep.mubr.bf16.mxu0 0
    %2733 = vmatmul.mubr.bf16.gmra.mrb[0].mxu0 %v2698
    %v2734 = vpop.f32.mrb[0].mxu0
    %v2735 = vadd.f32 0.0, %v2734
    %v2736 = vpop.f32.mrb[0].mxu0
    %v2737 = vpop.f32.mrb[0].mxu0
    %v2738 = vadd.f32 0.0, %v2737
    %v2739 = vpop.f32.mrb[0].mxu0
    %2740 = vdwg.mxu0
    %v2743 = vunpack.c.l.b16 %v2629
    %v2744 = vunpack.c.l.b16 %v2630
    %v2745 = vpack.c.b16 %v2744, %v2743
    %v2748 = vsel %vm873, %v2619, 0
    %2750 = vmatprep.subr.bf16.mxu0 0
    %2751 = vmatpush1.bf16.msra.mxu0 %v2745
    %2752 = vmatprep.subr.bf16.mxu0 0
    %2753 = vmatpush1.bf16.msra.mxu0 0
    %2754 = vmatprep.subr.bf16.mxu0 0
    %2755 = vmatpush1.bf16.msra.mxu0 0
    %2756 = vmatprep.subr.bf16.mxu0 0
    %2757 = vmatpush1.bf16.msra.mxu0 0
    %2758 = vmatprep.subr.bf16.mxu0 0
    %2759 = vmatpush1.bf16.msra.mxu0 0
    %2760 = vmatprep.subr.bf16.mxu0 0
    %2761 = vmatpush1.bf16.msra.mxu0 0
    %2762 = vmatprep.subr.bf16.mxu0 0
    %2763 = vmatpush1.bf16.msra.mxu0 0
    %2764 = vmatprep.subr.bf16.mxu0 0
    %2765 = vmatpush1.bf16.msra.mxu0 0
    %2766 = vmatprep.subr.bf16.mxu0 0
    %2767 = vmatpush1.bf16.msra.mxu0 0
    %2768 = vmatprep.subr.bf16.mxu0 0
    %2769 = vmatpush1.bf16.msra.mxu0 0
    %2770 = vmatprep.subr.bf16.mxu0 0
    %2771 = vmatpush1.bf16.msra.mxu0 0
    %2772 = vmatprep.subr.bf16.mxu0 0
    %2773 = vmatpush1.bf16.msra.mxu0 0
    %2774 = vmatprep.subr.bf16.mxu0 0
    %2775 = vmatpush1.bf16.msra.mxu0 0
    %2776 = vmatprep.subr.bf16.mxu0 0
    %2777 = vmatpush1.bf16.msra.mxu0 0
    %2778 = vmatprep.subr.bf16.mxu0 0
    %2779 = vmatpush1.bf16.msra.mxu0 0
    %2780 = vmatprep.subr.bf16.mxu0 0
    %2781 = vmatpush1.bf16.msra.mxu0 0
    %2782 = vmatprep.mubr.bf16.mxu0 0
    %2783 = vmatmul.mubr.bf16.gmra.mrb[0].mxu0 %v2748
    %v2784 = vpop.f32.mrb[0].mxu0
    %v2785 = vadd.f32 0.0, %v2784
    %v2786 = vpop.f32.mrb[0].mxu0
    %v2787 = vpop.f32.mrb[0].mxu0
    %v2788 = vadd.f32 0.0, %v2787
    %v2789 = vpop.f32.mrb[0].mxu0
    %2790 = vdwg.mxu0
    %v2793 = vunpack.c.l.b16 %v2631
    %v2794 = vunpack.c.l.b16 %v2632
    %v2795 = vpack.c.b16 %v2794, %v2793
    %v2798 = vsel %vm873, %v2620, 0
    %2800 = vmatprep.subr.bf16.mxu0 0
    %2801 = vmatpush1.bf16.msra.mxu0 %v2795
    %2802 = vmatprep.subr.bf16.mxu0 0
    %2803 = vmatpush1.bf16.msra.mxu0 0
    %2804 = vmatprep.subr.bf16.mxu0 0
    %2805 = vmatpush1.bf16.msra.mxu0 0
    %2806 = vmatprep.subr.bf16.mxu0 0
    %2807 = vmatpush1.bf16.msra.mxu0 0
    %2808 = vmatprep.subr.bf16.mxu0 0
    %2809 = vmatpush1.bf16.msra.mxu0 0
    %2810 = vmatprep.subr.bf16.mxu0 0
    %2811 = vmatpush1.bf16.msra.mxu0 0
    %2812 = vmatprep.subr.bf16.mxu0 0
    %2813 = vmatpush1.bf16.msra.mxu0 0
    %2814 = vmatprep.subr.bf16.mxu0 0
    %2815 = vmatpush1.bf16.msra.mxu0 0
    %2816 = vmatprep.subr.bf16.mxu0 0
    %2817 = vmatpush1.bf16.msra.mxu0 0
    %2818 = vmatprep.subr.bf16.mxu0 0
    %2819 = vmatpush1.bf16.msra.mxu0 0
    %2820 = vmatprep.subr.bf16.mxu0 0
    %2821 = vmatpush1.bf16.msra.mxu0 0
    %2822 = vmatprep.subr.bf16.mxu0 0
    %2823 = vmatpush1.bf16.msra.mxu0 0
    %2824 = vmatprep.subr.bf16.mxu0 0
    %2825 = vmatpush1.bf16.msra.mxu0 0
    %2826 = vmatprep.subr.bf16.mxu0 0
    %2827 = vmatpush1.bf16.msra.mxu0 0
    %2828 = vmatprep.subr.bf16.mxu0 0
    %2829 = vmatpush1.bf16.msra.mxu0 0
    %2830 = vmatprep.subr.bf16.mxu0 0
    %2831 = vmatpush1.bf16.msra.mxu0 0
    %2832 = vmatprep.mubr.bf16.mxu0 0
    %2833 = vmatmul.mubr.bf16.gmra.mrb[0].mxu0 %v2798
    %v2834 = vpop.f32.mrb[0].mxu0
    %v2835 = vadd.f32 0.0, %v2834
    %v2836 = vpop.f32.mrb[0].mxu0
    %v2837 = vpop.f32.mrb[0].mxu0
    %v2838 = vadd.f32 0.0, %v2837
    %v2839 = vpop.f32.mrb[0].mxu0
    %2840 = vdwg.mxu0
    %v2843 = vunpack.c.l.b16 %v2633
    %v2844 = vunpack.c.l.b16 %v2634
    %v2845 = vpack.c.b16 %v2844, %v2843
    %v2848 = vsel %vm873, %v2621, 0
    %2850 = vmatprep.subr.bf16.mxu0 0
    %2851 = vmatpush1.bf16.msra.mxu0 %v2845
    %2852 = vmatprep.subr.bf16.mxu0 0
    %2853 = vmatpush1.bf16.msra.mxu0 0
    %2854 = vmatprep.subr.bf16.mxu0 0
    %2855 = vmatpush1.bf16.msra.mxu0 0
    %2856 = vmatprep.subr.bf16.mxu0 0
    %2857 = vmatpush1.bf16.msra.mxu0 0
    %2858 = vmatprep.subr.bf16.mxu0 0
    %2859 = vmatpush1.bf16.msra.mxu0 0
    %2860 = vmatprep.subr.bf16.mxu0 0
    %2861 = vmatpush1.bf16.msra.mxu0 0
    %2862 = vmatprep.subr.bf16.mxu0 0
    %2863 = vmatpush1.bf16.msra.mxu0 0
    %2864 = vmatprep.subr.bf16.mxu0 0
    %2865 = vmatpush1.bf16.msra.mxu0 0
    %2866 = vmatprep.subr.bf16.mxu0 0
    %2867 = vmatpush1.bf16.msra.mxu0 0
    %2868 = vmatprep.subr.bf16.mxu0 0
    %2869 = vmatpush1.bf16.msra.mxu0 0
    %2870 = vmatprep.subr.bf16.mxu0 0
    %2871 = vmatpush1.bf16.msra.mxu0 0
    %2872 = vmatprep.subr.bf16.mxu0 0
    %2873 = vmatpush1.bf16.msra.mxu0 0
    %2874 = vmatprep.subr.bf16.mxu0 0
    %2875 = vmatpush1.bf16.msra.mxu0 0
    %2876 = vmatprep.subr.bf16.mxu0 0
    %2877 = vmatpush1.bf16.msra.mxu0 0
    %2878 = vmatprep.subr.bf16.mxu0 0
    %2879 = vmatpush1.bf16.msra.mxu0 0
    %2880 = vmatprep.subr.bf16.mxu0 0
    %2881 = vmatpush1.bf16.msra.mxu0 0
    %2882 = vmatprep.mubr.bf16.mxu0 0
    %2883 = vmatmul.mubr.bf16.gmra.mrb[0].mxu0 %v2848
    %v2884 = vpop.f32.mrb[0].mxu0
    %v2885 = vadd.f32 0.0, %v2884
    %v2886 = vpop.f32.mrb[0].mxu0
    %v2887 = vpop.f32.mrb[0].mxu0
    %v2888 = vadd.f32 0.0, %v2887
    %v2889 = vpop.f32.mrb[0].mxu0
    %2890 = vdwg.mxu0
    %v2893 = vunpack.c.l.b16 %v2635
    %v2894 = vunpack.c.l.b16 %v2636
    %v2895 = vpack.c.b16 %v2894, %v2893
    %v2898 = vsel %vm873, %v2622, 0
    %2900 = vmatprep.subr.bf16.mxu0 0
    %2901 = vmatpush1.bf16.msra.mxu0 %v2895
    %2902 = vmatprep.subr.bf16.mxu0 0
    %2903 = vmatpush1.bf16.msra.mxu0 0
    %2904 = vmatprep.subr.bf16.mxu0 0
    %2905 = vmatpush1.bf16.msra.mxu0 0
    %2906 = vmatprep.subr.bf16.mxu0 0
    %2907 = vmatpush1.bf16.msra.mxu0 0
    %2908 = vmatprep.subr.bf16.mxu0 0
    %2909 = vmatpush1.bf16.msra.mxu0 0
    %2910 = vmatprep.subr.bf16.mxu0 0
    %2911 = vmatpush1.bf16.msra.mxu0 0
    %2912 = vmatprep.subr.bf16.mxu0 0
    %2913 = vmatpush1.bf16.msra.mxu0 0
    %2914 = vmatprep.subr.bf16.mxu0 0
    %2915 = vmatpush1.bf16.msra.mxu0 0
    %2916 = vmatprep.subr.bf16.mxu0 0
    %2917 = vmatpush1.bf16.msra.mxu0 0
    %2918 = vmatprep.subr.bf16.mxu0 0
    %2919 = vmatpush1.bf16.msra.mxu0 0
    %2920 = vmatprep.subr.bf16.mxu0 0
    %2921 = vmatpush1.bf16.msra.mxu0 0
    %2922 = vmatprep.subr.bf16.mxu0 0
    %2923 = vmatpush1.bf16.msra.mxu0 0
    %2924 = vmatprep.subr.bf16.mxu0 0
    %2925 = vmatpush1.bf16.msra.mxu0 0
    %2926 = vmatprep.subr.bf16.mxu0 0
    %2927 = vmatpush1.bf16.msra.mxu0 0
    %2928 = vmatprep.subr.bf16.mxu0 0
    %2929 = vmatpush1.bf16.msra.mxu0 0
    %2930 = vmatprep.subr.bf16.mxu0 0
    %2931 = vmatpush1.bf16.msra.mxu0 0
    %2932 = vmatprep.mubr.bf16.mxu0 0
    %2933 = vmatmul.mubr.bf16.gmra.mrb[0].mxu0 %v2898
    %v2934 = vpop.f32.mrb[0].mxu0
    %v2935 = vadd.f32 0.0, %v2934
    %v2936 = vpop.f32.mrb[0].mxu0
    %v2937 = vpop.f32.mrb[0].mxu0
    %v2938 = vadd.f32 0.0, %v2937
    %v2939 = vpop.f32.mrb[0].mxu0
    %2940 = vdwg.mxu0
    %v2943 = vunpack.c.l.b16 %v2637
    %v2944 = vunpack.c.l.b16 %v2638
    %v2945 = vpack.c.b16 %v2944, %v2943
    %v2948 = vsel %vm873, %v2623, 0
    %2950 = vmatprep.subr.bf16.mxu0 0
    %2951 = vmatpush1.bf16.msra.mxu0 %v2945
    %2952 = vmatprep.subr.bf16.mxu0 0
    %2953 = vmatpush1.bf16.msra.mxu0 0
    %2954 = vmatprep.subr.bf16.mxu0 0
    %2955 = vmatpush1.bf16.msra.mxu0 0
    %2956 = vmatprep.subr.bf16.mxu0 0
    %2957 = vmatpush1.bf16.msra.mxu0 0
    %2958 = vmatprep.subr.bf16.mxu0 0
    %2959 = vmatpush1.bf16.msra.mxu0 0
    %2960 = vmatprep.subr.bf16.mxu0 0
    %2961 = vmatpush1.bf16.msra.mxu0 0
    %2962 = vmatprep.subr.bf16.mxu0 0
    %2963 = vmatpush1.bf16.msra.mxu0 0
    %2964 = vmatprep.subr.bf16.mxu0 0
    %2965 = vmatpush1.bf16.msra.mxu0 0
    %2966 = vmatprep.subr.bf16.mxu0 0
    %2967 = vmatpush1.bf16.msra.mxu0 0
    %2968 = vmatprep.subr.bf16.mxu0 0
    %2969 = vmatpush1.bf16.msra.mxu0 0
    %2970 = vmatprep.subr.bf16.mxu0 0
    %2971 = vmatpush1.bf16.msra.mxu0 0
    %2972 = vmatprep.subr.bf16.mxu0 0
    %2973 = vmatpush1.bf16.msra.mxu0 0
    %2974 = vmatprep.subr.bf16.mxu0 0
    %2975 = vmatpush1.bf16.msra.mxu0 0
    %2976 = vmatprep.subr.bf16.mxu0 0
    %2977 = vmatpush1.bf16.msra.mxu0 0
    %2978 = vmatprep.subr.bf16.mxu0 0
    %2979 = vmatpush1.bf16.msra.mxu0 0
    %2980 = vmatprep.subr.bf16.mxu0 0
    %2981 = vmatpush1.bf16.msra.mxu0 0
    %2982 = vmatprep.mubr.bf16.mxu0 0
    %2983 = vmatmul.mubr.bf16.gmra.mrb[0].mxu0 %v2948
    %v2984 = vpop.f32.mrb[0].mxu0
    %v2985 = vadd.f32 0.0, %v2984
    %v2986 = vpop.f32.mrb[0].mxu0
    %v2987 = vpop.f32.mrb[0].mxu0
    %v2988 = vadd.f32 0.0, %v2987
    %v2989 = vpop.f32.mrb[0].mxu0
    %2990 = vdwg.mxu0
    %v2993 = vunpack.c.l.b16 %v2639
    %v2994 = vunpack.c.l.b16 %v2640
    %v2995 = vpack.c.b16 %v2994, %v2993
    %v2998 = vsel %vm873, %v2624, 0
    %3000 = vmatprep.subr.bf16.mxu0 0
    %3001 = vmatpush1.bf16.msra.mxu0 %v2995
    %3002 = vmatprep.subr.bf16.mxu0 0
    %3003 = vmatpush1.bf16.msra.mxu0 0
    %3004 = vmatprep.subr.bf16.mxu0 0
    %3005 = vmatpush1.bf16.msra.mxu0 0
    %3006 = vmatprep.subr.bf16.mxu0 0
    %3007 = vmatpush1.bf16.msra.mxu0 0
    %3008 = vmatprep.subr.bf16.mxu0 0
    %3009 = vmatpush1.bf16.msra.mxu0 0
    %3010 = vmatprep.subr.bf16.mxu0 0
    %3011 = vmatpush1.bf16.msra.mxu0 0
    %3012 = vmatprep.subr.bf16.mxu0 0
    %3013 = vmatpush1.bf16.msra.mxu0 0
    %3014 = vmatprep.subr.bf16.mxu0 0
    %3015 = vmatpush1.bf16.msra.mxu0 0
    %3016 = vmatprep.subr.bf16.mxu0 0
    %3017 = vmatpush1.bf16.msra.mxu0 0
    %3018 = vmatprep.subr.bf16.mxu0 0
    %3019 = vmatpush1.bf16.msra.mxu0 0
    %3020 = vmatprep.subr.bf16.mxu0 0
    %3021 = vmatpush1.bf16.msra.mxu0 0
    %3022 = vmatprep.subr.bf16.mxu0 0
    %3023 = vmatpush1.bf16.msra.mxu0 0
    %3024 = vmatprep.subr.bf16.mxu0 0
    %3025 = vmatpush1.bf16.msra.mxu0 0
    %3026 = vmatprep.subr.bf16.mxu0 0
    %3027 = vmatpush1.bf16.msra.mxu0 0
    %3028 = vmatprep.subr.bf16.mxu0 0
    %3029 = vmatpush1.bf16.msra.mxu0 0
    %3030 = vmatprep.subr.bf16.mxu0 0
    %3031 = vmatpush1.bf16.msra.mxu0 0
    %3032 = vmatprep.mubr.bf16.mxu0 0
    %3033 = vmatmul.mubr.bf16.gmra.mrb[0].mxu0 %v2998
    %v3034 = vpop.f32.mrb[0].mxu0
    %v3035 = vadd.f32 0.0, %v3034
    %v3036 = vpop.f32.mrb[0].mxu0
    %v3037 = vpop.f32.mrb[0].mxu0
    %v3038 = vadd.f32 0.0, %v3037
    %v3039 = vpop.f32.mrb[0].mxu0
    %3040 = vdwg.mxu0
    %v3041 = vadd.f32 %v2685, %v2735
    %v3042 = vadd.f32 %v3041, %v2785
    %v3043 = vadd.f32 %v3042, %v2835
    %v3044 = vadd.f32 %v3043, %v2885
    %v3045 = vadd.f32 %v3044, %v2935
    %v3046 = vadd.f32 %v3045, %v2985
    %v3047 = vadd.f32 %v3046, %v3035
    %v3048 = vadd.f32 %v2688, %v2738
    %v3049 = vadd.f32 %v3048, %v2788
    %v3050 = vadd.f32 %v3049, %v2838
    %v3051 = vadd.f32 %v3050, %v2888
    %v3052 = vadd.f32 %v3051, %v2938
    %v3053 = vadd.f32 %v3052, %v2988
    %v3054 = vadd.f32 %v3053, %v3038
    %v3055 = vld [vmem:[%s3] sm:$0x1]
    %v3057 = vlaneseq
    %v3058 = vshrl.u32 %v3057, 7
    %v3059 = vsub.s32 0, %v3058
    %v3060 = vrot.slane %v3055, %v3059
    %v3062 = vadd.f32 %v3047, %v3060
    %v3063 = vadd.f32 %v3054, %v3060
    %3064 = vst [vmem:[#allocation2] sm:$0xff] %v3062
    %3065 = vst [vmem:[#allocation2 + $0x8] sm:$0xff] %v3063
    // Predicated region
    $region18: #{tpu_custom_call.1} parent=1 // pred_check
      _
    $region19: #{tpu_custom_call.1} parent=1 // pred_check_branch
      %3067 = sbr.rel (0) target = $region21
    $region20: #{tpu_custom_call.1} parent=1 // pred_region
      %s3069 = ssub.s32 256, 256
      %3070 = vsyncadd [#allocation3], %s3069
      %s3071 = sshll.u32 [#allocation2], 4
      %s3072 = int_to_ptr.vmem [resolvable:$true] %s3071
      %3077 = dma.vmem_to_hbm [thread:$0]  %s3072, 256, %s4, [#allocation3], 128, 128, 8
    $region21: #{tpu_custom_call.1} parent=1 // pred_fallthru
      _
    // Predicated region
    $region22: #{tpu_custom_call.1} parent=1 // pred_check
      _
    $region23: #{tpu_custom_call.1} parent=1 // pred_check_branch
      %3079 = sbr.rel (0) target = $region25
    $region24: #{tpu_custom_call.1} parent=1 // pred_region
      %3080 = dma.done [#allocation3], 256
    $region25: #{tpu_custom_call.1} parent=1 // pred_fallthru
      _
    %3081 = vsyncpa [#allocation3], 1

</llo_original>
